<compile_context>
chip_gen: v6e
topology: v6e:2x2x1
jax: 0.10.0
libtpu: 0.0.40
codegen_flags: <defaults>
</compile_context>

<pallas_src>
import jax
import jax.numpy as jnp
from jax.experimental import pallas as pl
from jax.experimental.pallas import tpu as pltpu


def _make_se_kernel(C, L, chunk_c):
    """Kernel over one (TB, C*L) block; chunk_c channels processed per step."""
    chunk_len = chunk_c * L
    n_chunks = C // chunk_c
    inv_L = 1.0 / float(L)
    unroll = n_chunks <= 4

    def kernel(x_ref, w1t_ref, w2t_ref, o_ref, pooled_ref):
        # x_ref/o_ref: (TB, C*L) flat, channel-major (elem (b, c*L + l) = x[b,c,l])
        # w1t: (C, hid) f32, w2t: (hid, C) f32, pooled_ref: (TB, C) f32 scratch
        TB = x_ref.shape[0]

        # ---- Pass 1: streaming average pool over L (f32 accumulation) -------
        @pl.loop(0, n_chunks, unroll=unroll)
        def _(ci):
            off = pl.multiple_of(ci * chunk_len, chunk_len)
            xc = x_ref[:, pl.ds(off, chunk_len)]                     # (TB, cc*L)
            xc = xc.reshape(TB, chunk_c, L).astype(jnp.float32)      # in-VMEM relayout
            pooled_ref[:, pl.ds(ci * chunk_c, chunk_c)] = (
                jnp.sum(xc, axis=-1) * inv_L)                        # (TB, cc)

        # ---- Excitation: tiny MXU dots, negligible vs. the HBM stream -------
        h = jnp.maximum(
            jnp.dot(pooled_ref[...], w1t_ref[...],
                    preferred_element_type=jnp.float32), 0.0)        # (TB, hid)
        s = jax.nn.sigmoid(
            jnp.dot(h, w2t_ref[...],
                    preferred_element_type=jnp.float32))             # (TB, C)
        pooled_ref[...] = s        # reuse scratch to hold per-channel scales

        # ---- Pass 2: streaming rescale (second read of x_ref, lane-dense st) -
        @pl.loop(0, n_chunks, unroll=unroll)
        def _(ci):
            off = pl.multiple_of(ci * chunk_len, chunk_len)
            xc = x_ref[:, pl.ds(off, chunk_len)].reshape(TB, chunk_c, L)
            sc = pooled_ref[:, pl.ds(ci * chunk_c, chunk_c)]         # (TB, cc) f32
            yc = (xc.astype(jnp.float32) * sc[:, :, None]).astype(o_ref.dtype)
            o_ref[:, pl.ds(off, chunk_len)] = yc.reshape(TB, chunk_len)

    return kernel


def _pick_batch_tile(batch, bytes_per_sample, budget_bytes):
    """Samples per block. tb is a multiple of 8 (clean sublane tiling) unless it
    covers the whole batch; best-effort even grid count for 2-TC balance."""
    max_tb = max(1, budget_bytes // max(1, bytes_per_sample))
    if max_tb >= batch:
        # Whole batch fits one block; split once (for megacore) when big enough.
        half = -(-(-(-batch // 2)) // 8) * 8
        if batch >= 16 and half * bytes_per_sample <= budget_bytes:
            return half
        return batch
    tb = (max_tb // 8) * 8
    if tb == 0:
        # Even 8 samples overshoot the budget; take them anyway, vmem_limit is
        # derived from the actual block size below.
        return min(batch, 8)
    steps = -(-batch // tb)
    if steps > 1 and steps % 2 == 1:
        # Nudge toward an even number of grid steps (2 TensorCores, "parallel").
        for tb2 in range(tb - 8, max(7, tb - 64), -8):
            if tb2 >= 8 and (-(-batch // tb2)) % 2 == 0:
                tb = tb2
                break
    return tb


def _pick_channel_chunk(C, L, tb, max_chunk_bytes=1 << 20):
    """Largest divisor of C whose (tb, cc*L) f32 working chunk stays small."""
    best = 1
    for cc in range(1, C + 1):
        if C % cc:
            continue
        if cc == 1 or tb * cc * L * 4 <= max_chunk_bytes:
            best = cc
        else:
            break
    return best


@jax.jit
def se_layer(x, w1, w2):
    B, C, L = x.shape
    hid = w1.shape[0]
    assert w1.shape == (hid, C) and w2.shape == (C, hid)

    # Free reshape (contiguous trailing dims): no HBM copy, unlike a transpose.
    x_flat = x.reshape(B, C * L)
    w1t = w1.T.astype(jnp.float32)                         # (C, hid)
    w2t = w2.T.astype(jnp.float32)                         # (hid, C)

    itemsize = jnp.dtype(x.dtype).itemsize
    bytes_per_sample = C * L * itemsize
    w_bytes = 2 * C * hid * 4

    # Generation-aware VMEM budget: leave headroom under physical capacity.
    try:
        phys_vmem = int(pltpu.get_tpu_info().vmem_capacity_bytes)
    except Exception:
        phys_vmem = 64 << 20        # most conservative (v7x per-TC VMEM)
    vmem_cap = max(24 << 20, min(phys_vmem - (12 << 20), 100 << 20))

    # In and out blocks are both double-buffered -> 4x block bytes resident.
    budget_bytes = max(1 << 20, (vmem_cap - 2 * w_bytes - (4 << 20)) // 4)
    tb = _pick_batch_tile(B, bytes_per_sample, budget_bytes)
    # TODO(synk): if a single sample's (C*L) slab exceeds the block budget, a
    # two-phase scheme (pool over L tiles, then rescale) is required — the
    # scale needs the mean over ALL of L, so per-L-tile scales are not enough.

    chunk_c = _pick_channel_chunk(C, L, tb)

    block_bytes = tb * bytes_per_sample
    pooled_bytes = tb * C * 4
    vmem_needed = 4 * block_bytes + 2 * w_bytes + pooled_bytes + (2 << 20)
    vmem_limit = int(min(max(vmem_needed, 16 << 20), vmem_cap))

    kernel = _make_se_kernel(C, L, chunk_c)
    CL = C * L

    out_flat = pl.pallas_call(
        kernel,
        out_shape=jax.ShapeDtypeStruct((B, CL), x.dtype),
        grid_spec=pltpu.PrefetchScalarGridSpec(
            num_scalar_prefetch=0,
            grid=(pl.cdiv(B, tb),),
            in_specs=[
                pl.BlockSpec((tb, CL), lambda b: (b, 0)),     # x slab (lane-dense)
                pl.BlockSpec((C, hid), lambda b: (0, 0)),     # W1^T (resident)
                pl.BlockSpec((hid, C), lambda b: (0, 0)),     # W2^T (resident)
            ],
            out_specs=pl.BlockSpec((tb, CL), lambda b: (b, 0)),
            scratch_shapes=[pltpu.VMEM((tb, C), jnp.float32)],  # pooled / scales
        ),
        compiler_params=pltpu.CompilerParams(
            dimension_semantics=("parallel",),
            vmem_limit_bytes=vmem_limit,
        ),
    )(x_flat, w1t, w2t)

    return out_flat.reshape(B, C, L)


def se_layer_ref(x, w1, w2):
    # pure-JAX reference for correctness checking
    y = jnp.mean(x.astype(jnp.float32), axis=2)               # (B, C)
    h = jnp.maximum(y @ w1.T.astype(jnp.float32), 0.0)        # (B, C//r)
    s = jax.nn.sigmoid(h @ w2.T.astype(jnp.float32))          # (B, C)
    return (x.astype(jnp.float32) * s[:, :, None]).astype(x.dtype)


if __name__ == "__main__":
    B, C, L = 2, 64, 16
    reduction = 16
    hid = C // reduction                                       # 4

    key = jax.random.PRNGKey(0)
    kx, k1, k2 = jax.random.split(key, 3)

    x = jax.random.normal(kx, (B, C, L), dtype=jnp.float32)
    # Deterministic synthetic weights (PyTorch Linear stores (out, in))
    w1 = jax.random.normal(k1, (hid, C), dtype=jnp.float32) * (1.0 / jnp.sqrt(C))
    w2 = jax.random.normal(k2, (C, hid), dtype=jnp.float32) * (1.0 / jnp.sqrt(hid))

    out = jax.block_until_ready(se_layer(x, w1, w2))
    ref = se_layer_ref(x, w1, w2)

    assert out.shape == (B, C, L)
    assert jnp.allclose(out, ref, atol=1e-5, rtol=1e-5)

    print("KERNEL_OK")
</pallas_src>

<mosaic_0001>
module attributes {stable_mosaic.version = 11 : i64} {
  func.func @kernel(%arg0: i32, %arg1: memref<2x1024xf32, #tpu.memory_space<vmem>>, %arg2: memref<64x4xf32, #tpu.memory_space<vmem>>, %arg3: memref<4x64xf32, #tpu.memory_space<vmem>>, %arg4: memref<2x1024xf32, #tpu.memory_space<vmem>>, %arg5: memref<2x64xf32, #tpu.memory_space<vmem>>) attributes {dimension_semantics = [#tpu.dimension_semantics<parallel>], iteration_bounds = array<i64: 1>, scalar_prefetch = 0 : i64, scratch_operands = 1 : i64, tpu.core_type = #tpu.core_type<tc>, window_params = [{transform_indices = @transform_0, window_bounds = array<i64: 2, 1024>}, {pipeline_mode = #tpu.pipeline_mode<synchronous>, transform_indices = @transform_1, window_bounds = array<i64: 64, 4>}, {pipeline_mode = #tpu.pipeline_mode<synchronous>, transform_indices = @transform_2, window_bounds = array<i64: 4, 64>}, {transform_indices = @transform_3, window_bounds = array<i64: 2, 1024>}]} {
    %c0_i32 = arith.constant 0 : i32
    %c1_i32 = arith.constant 1 : i32
    %0 = arith.muli %c0_i32, %c1_i32 : i32
    %c0_i32_0 = arith.constant 0 : i32
    %1 = arith.addi %c0_i32_0, %0 : i32
    %c1024_i32 = arith.constant 1024 : i32
    %2 = arith.muli %1, %c1024_i32 : i32
    %3 = tpu.assume_multiple %2, 1024 : i32
    %c0 = arith.constant 0 : index
    %4 = arith.index_cast %3 : i32 to index
    %5 = vector.load %arg1[%c0, %4] : memref<2x1024xf32, #tpu.memory_space<vmem>>, vector<2x1024xf32>
    %6 = vector.shape_cast %5 : vector<2x1024xf32> to vector<2x64x16xf32>
    %cst = arith.constant dense<0.000000e+00> : vector<2x64xf32>
    %7 = vector.multi_reduction <add>, %6, %cst [2] : vector<2x64x16xf32> to vector<2x64xf32>
    %cst_1 = arith.constant 6.250000e-02 : f32
    %8 = vector.broadcast %cst_1 : f32 to vector<2x64xf32>
    %9 = arith.mulf %7, %8 : vector<2x64xf32>
    %c64_i32 = arith.constant 64 : i32
    %10 = arith.muli %1, %c64_i32 : i32
    %c0_2 = arith.constant 0 : index
    %11 = arith.index_cast %10 : i32 to index
    %12 = vector.load %arg5[%c0_2, %11] : memref<2x64xf32, #tpu.memory_space<vmem>>, vector<2x64xf32>
    tpu.vector_store %arg5[%c0_2, %11], %9 {strides = array<i32>} : memref<2x64xf32, #tpu.memory_space<vmem>>, vector<2x64xf32>,
    %c1_i32_3 = arith.constant 1 : i32
    %c0_4 = arith.constant 0 : index
    %c0_5 = arith.constant 0 : index
    %13 = vector.load %arg5[%c0_4, %c0_5] : memref<2x64xf32, #tpu.memory_space<vmem>>, vector<2x64xf32>
    %c0_6 = arith.constant 0 : index
    %c0_7 = arith.constant 0 : index
    %14 = vector.load %arg2[%c0_6, %c0_7] : memref<64x4xf32, #tpu.memory_space<vmem>>, vector<64x4xf32>
    %cst_8 = arith.constant dense<0.000000e+00> : vector<2x4xf32>
    %15 = tpu.matmul %13, %14, %cst_8 {dimension_numbers = #tpu.dot_dimension_numbers<[1], [0], [0], [1], [0, 0, 1, 1], [], []>} : vector<2x64xf32>, vector<64x4xf32>, vector<2x4xf32> -> vector<2x4xf32>
    %cst_9 = arith.constant 0.000000e+00 : f32
    %16 = vector.broadcast %cst_9 : f32 to vector<2x4xf32>
    %17 = arith.maximumf %15, %16 : vector<2x4xf32>
    %c0_10 = arith.constant 0 : index
    %c0_11 = arith.constant 0 : index
    %18 = vector.load %arg3[%c0_10, %c0_11] : memref<4x64xf32, #tpu.memory_space<vmem>>, vector<4x64xf32>
    %cst_12 = arith.constant dense<0.000000e+00> : vector<2x64xf32>
    %19 = tpu.matmul %17, %18, %cst_12 {dimension_numbers = #tpu.dot_dimension_numbers<[1], [0], [0], [1], [0, 0, 1, 1], [], []>} : vector<2x4xf32>, vector<4x64xf32>, vector<2x64xf32> -> vector<2x64xf32>
    %20 = arith.negf %19 : vector<2x64xf32>
    %21 = math.exp %20 : vector<2x64xf32>
    %cst_13 = arith.constant 1.000000e+00 : f32
    %22 = vector.broadcast %cst_13 : f32 to vector<2x64xf32>
    %23 = arith.addf %22, %21 : vector<2x64xf32>
    %24 = arith.divf %22, %23 : vector<2x64xf32>
    %c0_14 = arith.constant 0 : index
    %c0_15 = arith.constant 0 : index
    %25 = vector.load %arg5[%c0_14, %c0_15] : memref<2x64xf32, #tpu.memory_space<vmem>>, vector<2x64xf32>
    tpu.vector_store %arg5[%c0_14, %c0_15], %24 {strides = array<i32>} : memref<2x64xf32, #tpu.memory_space<vmem>>, vector<2x64xf32>,
    %c0_i32_16 = arith.constant 0 : i32
    %c1_i32_17 = arith.constant 1 : i32
    %26 = arith.muli %c0_i32_16, %c1_i32_17 : i32
    %c0_i32_18 = arith.constant 0 : i32
    %27 = arith.addi %c0_i32_18, %26 : i32
    %c1024_i32_19 = arith.constant 1024 : i32
    %28 = arith.muli %27, %c1024_i32_19 : i32
    %29 = tpu.assume_multiple %28, 1024 : i32
    %c0_20 = arith.constant 0 : index
    %30 = arith.index_cast %29 : i32 to index
    %31 = vector.load %arg1[%c0_20, %30] : memref<2x1024xf32, #tpu.memory_space<vmem>>, vector<2x1024xf32>
    %32 = vector.shape_cast %31 : vector<2x1024xf32> to vector<2x64x16xf32>
    %c64_i32_21 = arith.constant 64 : i32
    %33 = arith.muli %27, %c64_i32_21 : i32
    %c0_22 = arith.constant 0 : index
    %34 = arith.index_cast %33 : i32 to index
    %35 = vector.load %arg5[%c0_22, %34] : memref<2x64xf32, #tpu.memory_space<vmem>>, vector<2x64xf32>
    %36 = vector.shape_cast %35 : vector<2x64xf32> to vector<2x64x1xf32>
    %37 = vector.broadcast %36 : vector<2x64x1xf32> to vector<2x64x16xf32>
    %38 = arith.mulf %32, %37 : vector<2x64x16xf32>
    %39 = vector.shape_cast %38 : vector<2x64x16xf32> to vector<2x1024xf32>
    %c0_23 = arith.constant 0 : index
    %40 = arith.index_cast %29 : i32 to index
    %41 = vector.load %arg4[%c0_23, %40] : memref<2x1024xf32, #tpu.memory_space<vmem>>, vector<2x1024xf32>
    tpu.vector_store %arg4[%c0_23, %40], %39 {strides = array<i32>} : memref<2x1024xf32, #tpu.memory_space<vmem>>, vector<2x1024xf32>,
    %c1_i32_24 = arith.constant 1 : i32
    return
  }
  func.func @transform_0(%arg0: i32) -> (i32, i32) {
    %c0_i32 = arith.constant 0 : i32
    %c0_i32_0 = arith.constant 0 : i32
    return %arg0, %c0_i32 : i32, i32
  }
  func.func @transform_1(%arg0: i32) -> (i32, i32) {
    %c0_i32 = arith.constant 0 : i32
    %c0_i32_0 = arith.constant 0 : i32
    %c0_i32_1 = arith.constant 0 : i32
    return %c0_i32, %c0_i32_0 : i32, i32
  }
  func.func @transform_2(%arg0: i32) -> (i32, i32) {
    %c0_i32 = arith.constant 0 : i32
    %c0_i32_0 = arith.constant 0 : i32
    %c0_i32_1 = arith.constant 0 : i32
    return %c0_i32, %c0_i32_0 : i32, i32
  }
  func.func @transform_3(%arg0: i32) -> (i32, i32) {
    %c0_i32 = arith.constant 0 : i32
    %c0_i32_0 = arith.constant 0 : i32
    return %arg0, %c0_i32 : i32, i32
  }
}

</mosaic_0001>

<llo_original>
// kernel: se_layer.1
$region0: #{se_layer.1}
  #allocation0 [shape = 'u32[]', space=smem, size = 0x4, offset = 0x4, fixed_abs, tag = 'smem constant byte address 0x4 - core index']
  #allocation1 [shape = 'u32[144,128]{1,0:T(1,128)}', space=vmem, size = 0x12000, scoped, tag = 'internal scratch']
  #allocation2 [shape = 'f32[2,64]{1,0:T(2,128)}', space=vmem, size = 0x400, scoped, tag = 'scratch operand']
  %s0 = inlined_call_operand.vmem [shape: f32[2,1024], index: 0, kind: input, shape index: {}]
  %s1 = inlined_call_operand.vmem [shape: f32[64,4], index: 1, kind: input, shape index: {}]
  %s2 = inlined_call_operand.vmem [shape: f32[4,64], index: 2, kind: input, shape index: {}]
  %s3 = inlined_call_operand.vmem [shape: f32[2,1024], index: 3, kind: output, shape index: {}]
  %s4 = sld [smem:[#allocation0]]
  $region22: #{se_layer.1} parent=0
    _
  %s6 = ssub.s32 1, %s4
  %s7 = scalar_select 0, %s6, %s4
  // Predicated region
  $region2: #{se_layer.1} parent=0 // pred_check
    _
  $region3: #{se_layer.1} parent=0 // pred_check_branch
    %9 = sbr.rel (0) target = $region5
  $region4: #{se_layer.1} parent=0 // pred_region
    _
  $region5: #{se_layer.1} parent=0 // pred_fallthru
    _
  // Predicated region
  $region6: #{se_layer.1} parent=0 // pred_check
    _
  $region7: #{se_layer.1} parent=0 // pred_check_branch
    %11 = sbr.rel (0) target = $region9
  $region8: #{se_layer.1} parent=0 // pred_region
    _
  $region9: #{se_layer.1} parent=0 // pred_fallthru
    _
  // Predicated region
  $region10: #{se_layer.1} parent=0 // pred_check
    _
  $region11: #{se_layer.1} parent=0 // pred_check_branch
    %13 = sbr.rel (0) target = $region13
  $region12: #{se_layer.1} parent=0 // pred_region
    _
  $region13: #{se_layer.1} parent=0 // pred_fallthru
    _
  %v14 = vld [vmem:[%s0] sm:$0xff]
  %v15 = vld [vmem:[%s0 + $0x8] sm:$0xff]
  %v17 = vrot.slane %v14, 2
  %19 = vrot.lane.b32.xlu0 %v14, 112
  %v20 = vpop.permute.xlu0 %19
  %v21 = vrot.slane %v20, 2
  %23 = vrot.lane.b32.xlu0 %v14, 96
  %v24 = vpop.permute.xlu0 %23
  %v25 = vrot.slane %v24, 2
  %27 = vrot.lane.b32.xlu0 %v14, 80
  %v28 = vpop.permute.xlu0 %27
  %v29 = vrot.slane %v28, 2
  %31 = vrot.lane.b32.xlu0 %v14, 64
  %v32 = vpop.permute.xlu0 %31
  %v33 = vrot.slane %v32, 2
  %35 = vrot.lane.b32.xlu0 %v14, 48
  %v36 = vpop.permute.xlu0 %35
  %v37 = vrot.slane %v36, 2
  %39 = vrot.lane.b32.xlu0 %v14, 32
  %v40 = vpop.permute.xlu0 %39
  %v41 = vrot.slane %v40, 2
  %43 = vrot.lane.b32.xlu0 %v14, 16
  %v44 = vpop.permute.xlu0 %43
  %v45 = vrot.slane %v44, 2
  %v47 = vrot.slane %v14, 4
  %v49 = vrot.slane %v20, 4
  %v51 = vrot.slane %v24, 4
  %v53 = vrot.slane %v28, 4
  %v55 = vrot.slane %v32, 4
  %v57 = vrot.slane %v36, 4
  %v59 = vrot.slane %v40, 4
  %v61 = vrot.slane %v44, 4
  %v63 = vrot.slane %v14, 6
  %v65 = vrot.slane %v20, 6
  %v67 = vrot.slane %v24, 6
  %v69 = vrot.slane %v28, 6
  %v71 = vrot.slane %v32, 6
  %v73 = vrot.slane %v36, 6
  %v75 = vrot.slane %v40, 6
  %v77 = vrot.slane %v44, 6
  %v80 = vrot.slane %v15, 2
  %82 = vrot.lane.b32.xlu0 %v15, 112
  %v83 = vpop.permute.xlu0 %82
  %v84 = vrot.slane %v83, 2
  %86 = vrot.lane.b32.xlu0 %v15, 96
  %v87 = vpop.permute.xlu0 %86
  %v88 = vrot.slane %v87, 2
  %90 = vrot.lane.b32.xlu0 %v15, 80
  %v91 = vpop.permute.xlu0 %90
  %v92 = vrot.slane %v91, 2
  %94 = vrot.lane.b32.xlu0 %v15, 64
  %v95 = vpop.permute.xlu0 %94
  %v96 = vrot.slane %v95, 2
  %98 = vrot.lane.b32.xlu0 %v15, 48
  %v99 = vpop.permute.xlu0 %98
  %v100 = vrot.slane %v99, 2
  %102 = vrot.lane.b32.xlu0 %v15, 32
  %v103 = vpop.permute.xlu0 %102
  %v104 = vrot.slane %v103, 2
  %106 = vrot.lane.b32.xlu0 %v15, 16
  %v107 = vpop.permute.xlu0 %106
  %v108 = vrot.slane %v107, 2
  %v110 = vrot.slane %v15, 4
  %v112 = vrot.slane %v83, 4
  %v114 = vrot.slane %v87, 4
  %v116 = vrot.slane %v91, 4
  %v118 = vrot.slane %v95, 4
  %v120 = vrot.slane %v99, 4
  %v122 = vrot.slane %v103, 4
  %v124 = vrot.slane %v107, 4
  %v126 = vrot.slane %v15, 6
  %v128 = vrot.slane %v83, 6
  %v130 = vrot.slane %v87, 6
  %v132 = vrot.slane %v91, 6
  %v134 = vrot.slane %v95, 6
  %v136 = vrot.slane %v99, 6
  %v138 = vrot.slane %v103, 6
  %v140 = vrot.slane %v107, 6
  %v156 = vcombine.low %v14, %v20
  %v158 = vunpack.c.l.s4 1934713408
  %v159 = vunpack.c.0.s8 %v158
  %v160 = vlaneseq
  %v161 = vshrl.u32 %v160, 7
  %v162 = vsub.s32 %v159, %v161
  %v163 = vrot.slane %v156, %v162
  %v164 = vcombine.high %v163, 0.0
  %v165 = vcombine.low %v24, %v28
  %v167 = vunpack.c.l.s4 1934713408
  %v168 = vunpack.c.0.s8 %v167
  %v169 = vlaneseq
  %v170 = vshrl.u32 %v169, 7
  %v171 = vsub.s32 %v168, %v170
  %v172 = vrot.slane %v165, %v171
  %v173 = vcombine.high %v172, 0.0
  %v174 = vcombine.low %v32, %v36
  %v176 = vunpack.c.l.s4 1934713408
  %v177 = vunpack.c.0.s8 %v176
  %v178 = vlaneseq
  %v179 = vshrl.u32 %v178, 7
  %v180 = vsub.s32 %v177, %v179
  %v181 = vrot.slane %v174, %v180
  %v182 = vcombine.high %v181, 0.0
  %v183 = vcombine.low %v40, %v44
  %v185 = vunpack.c.l.s4 1934713408
  %v186 = vunpack.c.0.s8 %v185
  %v187 = vlaneseq
  %v188 = vshrl.u32 %v187, 7
  %v189 = vsub.s32 %v186, %v188
  %v190 = vrot.slane %v183, %v189
  %v191 = vcombine.high %v190, 0.0
  %v192 = vcombine.low %v17, %v21
  %v194 = vunpack.c.l.s4 1934713408
  %v195 = vunpack.c.0.s8 %v194
  %v196 = vlaneseq
  %v197 = vshrl.u32 %v196, 7
  %v198 = vsub.s32 %v195, %v197
  %v199 = vrot.slane %v192, %v198
  %v200 = vcombine.high %v199, 0.0
  %v201 = vcombine.low %v25, %v29
  %v203 = vunpack.c.l.s4 1934713408
  %v204 = vunpack.c.0.s8 %v203
  %v205 = vlaneseq
  %v206 = vshrl.u32 %v205, 7
  %v207 = vsub.s32 %v204, %v206
  %v208 = vrot.slane %v201, %v207
  %v209 = vcombine.high %v208, 0.0
  %v210 = vcombine.low %v33, %v37
  %v212 = vunpack.c.l.s4 1934713408
  %v213 = vunpack.c.0.s8 %v212
  %v214 = vlaneseq
  %v215 = vshrl.u32 %v214, 7
  %v216 = vsub.s32 %v213, %v215
  %v217 = vrot.slane %v210, %v216
  %v218 = vcombine.high %v217, 0.0
  %v219 = vcombine.low %v41, %v45
  %v221 = vunpack.c.l.s4 1934713408
  %v222 = vunpack.c.0.s8 %v221
  %v223 = vlaneseq
  %v224 = vshrl.u32 %v223, 7
  %v225 = vsub.s32 %v222, %v224
  %v226 = vrot.slane %v219, %v225
  %v227 = vcombine.high %v226, 0.0
  %v228 = vcombine.low %v47, %v49
  %v230 = vunpack.c.l.s4 1934713408
  %v231 = vunpack.c.0.s8 %v230
  %v232 = vlaneseq
  %v233 = vshrl.u32 %v232, 7
  %v234 = vsub.s32 %v231, %v233
  %v235 = vrot.slane %v228, %v234
  %v236 = vcombine.high %v235, 0.0
  %v237 = vcombine.low %v51, %v53
  %v239 = vunpack.c.l.s4 1934713408
  %v240 = vunpack.c.0.s8 %v239
  %v241 = vlaneseq
  %v242 = vshrl.u32 %v241, 7
  %v243 = vsub.s32 %v240, %v242
  %v244 = vrot.slane %v237, %v243
  %v245 = vcombine.high %v244, 0.0
  %v246 = vcombine.low %v55, %v57
  %v248 = vunpack.c.l.s4 1934713408
  %v249 = vunpack.c.0.s8 %v248
  %v250 = vlaneseq
  %v251 = vshrl.u32 %v250, 7
  %v252 = vsub.s32 %v249, %v251
  %v253 = vrot.slane %v246, %v252
  %v254 = vcombine.high %v253, 0.0
  %v255 = vcombine.low %v59, %v61
  %v257 = vunpack.c.l.s4 1934713408
  %v258 = vunpack.c.0.s8 %v257
  %v259 = vlaneseq
  %v260 = vshrl.u32 %v259, 7
  %v261 = vsub.s32 %v258, %v260
  %v262 = vrot.slane %v255, %v261
  %v263 = vcombine.high %v262, 0.0
  %v264 = vcombine.low %v63, %v65
  %v266 = vunpack.c.l.s4 1934713408
  %v267 = vunpack.c.0.s8 %v266
  %v268 = vlaneseq
  %v269 = vshrl.u32 %v268, 7
  %v270 = vsub.s32 %v267, %v269
  %v271 = vrot.slane %v264, %v270
  %v272 = vcombine.high %v271, 0.0
  %v273 = vcombine.low %v67, %v69
  %v275 = vunpack.c.l.s4 1934713408
  %v276 = vunpack.c.0.s8 %v275
  %v277 = vlaneseq
  %v278 = vshrl.u32 %v277, 7
  %v279 = vsub.s32 %v276, %v278
  %v280 = vrot.slane %v273, %v279
  %v281 = vcombine.high %v280, 0.0
  %v282 = vcombine.low %v71, %v73
  %v284 = vunpack.c.l.s4 1934713408
  %v285 = vunpack.c.0.s8 %v284
  %v286 = vlaneseq
  %v287 = vshrl.u32 %v286, 7
  %v288 = vsub.s32 %v285, %v287
  %v289 = vrot.slane %v282, %v288
  %v290 = vcombine.high %v289, 0.0
  %v291 = vcombine.low %v75, %v77
  %v293 = vunpack.c.l.s4 1934713408
  %v294 = vunpack.c.0.s8 %v293
  %v295 = vlaneseq
  %v296 = vshrl.u32 %v295, 7
  %v297 = vsub.s32 %v294, %v296
  %v298 = vrot.slane %v291, %v297
  %v299 = vcombine.high %v298, 0.0
  %v300 = vcombine.low %v15, %v83
  %v302 = vunpack.c.l.s4 1934713408
  %v303 = vunpack.c.0.s8 %v302
  %v304 = vlaneseq
  %v305 = vshrl.u32 %v304, 7
  %v306 = vsub.s32 %v303, %v305
  %v307 = vrot.slane %v300, %v306
  %v308 = vcombine.high %v307, 0.0
  %v309 = vcombine.low %v87, %v91
  %v311 = vunpack.c.l.s4 1934713408
  %v312 = vunpack.c.0.s8 %v311
  %v313 = vlaneseq
  %v314 = vshrl.u32 %v313, 7
  %v315 = vsub.s32 %v312, %v314
  %v316 = vrot.slane %v309, %v315
  %v317 = vcombine.high %v316, 0.0
  %v318 = vcombine.low %v95, %v99
  %v320 = vunpack.c.l.s4 1934713408
  %v321 = vunpack.c.0.s8 %v320
  %v322 = vlaneseq
  %v323 = vshrl.u32 %v322, 7
  %v324 = vsub.s32 %v321, %v323
  %v325 = vrot.slane %v318, %v324
  %v326 = vcombine.high %v325, 0.0
  %v327 = vcombine.low %v103, %v107
  %v329 = vunpack.c.l.s4 1934713408
  %v330 = vunpack.c.0.s8 %v329
  %v331 = vlaneseq
  %v332 = vshrl.u32 %v331, 7
  %v333 = vsub.s32 %v330, %v332
  %v334 = vrot.slane %v327, %v333
  %v335 = vcombine.high %v334, 0.0
  %v336 = vcombine.low %v80, %v84
  %v338 = vunpack.c.l.s4 1934713408
  %v339 = vunpack.c.0.s8 %v338
  %v340 = vlaneseq
  %v341 = vshrl.u32 %v340, 7
  %v342 = vsub.s32 %v339, %v341
  %v343 = vrot.slane %v336, %v342
  %v344 = vcombine.high %v343, 0.0
  %v345 = vcombine.low %v88, %v92
  %v347 = vunpack.c.l.s4 1934713408
  %v348 = vunpack.c.0.s8 %v347
  %v349 = vlaneseq
  %v350 = vshrl.u32 %v349, 7
  %v351 = vsub.s32 %v348, %v350
  %v352 = vrot.slane %v345, %v351
  %v353 = vcombine.high %v352, 0.0
  %v354 = vcombine.low %v96, %v100
  %v356 = vunpack.c.l.s4 1934713408
  %v357 = vunpack.c.0.s8 %v356
  %v358 = vlaneseq
  %v359 = vshrl.u32 %v358, 7
  %v360 = vsub.s32 %v357, %v359
  %v361 = vrot.slane %v354, %v360
  %v362 = vcombine.high %v361, 0.0
  %v363 = vcombine.low %v104, %v108
  %v365 = vunpack.c.l.s4 1934713408
  %v366 = vunpack.c.0.s8 %v365
  %v367 = vlaneseq
  %v368 = vshrl.u32 %v367, 7
  %v369 = vsub.s32 %v366, %v368
  %v370 = vrot.slane %v363, %v369
  %v371 = vcombine.high %v370, 0.0
  %v372 = vcombine.low %v110, %v112
  %v374 = vunpack.c.l.s4 1934713408
  %v375 = vunpack.c.0.s8 %v374
  %v376 = vlaneseq
  %v377 = vshrl.u32 %v376, 7
  %v378 = vsub.s32 %v375, %v377
  %v379 = vrot.slane %v372, %v378
  %v380 = vcombine.high %v379, 0.0
  %v381 = vcombine.low %v114, %v116
  %v383 = vunpack.c.l.s4 1934713408
  %v384 = vunpack.c.0.s8 %v383
  %v385 = vlaneseq
  %v386 = vshrl.u32 %v385, 7
  %v387 = vsub.s32 %v384, %v386
  %v388 = vrot.slane %v381, %v387
  %v389 = vcombine.high %v388, 0.0
  %v390 = vcombine.low %v118, %v120
  %v392 = vunpack.c.l.s4 1934713408
  %v393 = vunpack.c.0.s8 %v392
  %v394 = vlaneseq
  %v395 = vshrl.u32 %v394, 7
  %v396 = vsub.s32 %v393, %v395
  %v397 = vrot.slane %v390, %v396
  %v398 = vcombine.high %v397, 0.0
  %v399 = vcombine.low %v122, %v124
  %v401 = vunpack.c.l.s4 1934713408
  %v402 = vunpack.c.0.s8 %v401
  %v403 = vlaneseq
  %v404 = vshrl.u32 %v403, 7
  %v405 = vsub.s32 %v402, %v404
  %v406 = vrot.slane %v399, %v405
  %v407 = vcombine.high %v406, 0.0
  %v408 = vcombine.low %v126, %v128
  %v410 = vunpack.c.l.s4 1934713408
  %v411 = vunpack.c.0.s8 %v410
  %v412 = vlaneseq
  %v413 = vshrl.u32 %v412, 7
  %v414 = vsub.s32 %v411, %v413
  %v415 = vrot.slane %v408, %v414
  %v416 = vcombine.high %v415, 0.0
  %v417 = vcombine.low %v130, %v132
  %v419 = vunpack.c.l.s4 1934713408
  %v420 = vunpack.c.0.s8 %v419
  %v421 = vlaneseq
  %v422 = vshrl.u32 %v421, 7
  %v423 = vsub.s32 %v420, %v422
  %v424 = vrot.slane %v417, %v423
  %v425 = vcombine.high %v424, 0.0
  %v426 = vcombine.low %v134, %v136
  %v428 = vunpack.c.l.s4 1934713408
  %v429 = vunpack.c.0.s8 %v428
  %v430 = vlaneseq
  %v431 = vshrl.u32 %v430, 7
  %v432 = vsub.s32 %v429, %v431
  %v433 = vrot.slane %v426, %v432
  %v434 = vcombine.high %v433, 0.0
  %v435 = vcombine.low %v138, %v140
  %v437 = vunpack.c.l.s4 1934713408
  %v438 = vunpack.c.0.s8 %v437
  %v439 = vlaneseq
  %v440 = vshrl.u32 %v439, 7
  %v441 = vsub.s32 %v438, %v440
  %v442 = vrot.slane %v435, %v441
  %v443 = vcombine.high %v442, 0.0
  %v508 = vcombine.low %v163, %v172
  %v509 = vcombine.low %v181, %v190
  %v511 = vunpack.c.l.s4 1983009808
  %v512 = vunpack.c.0.s8 %v511
  %v513 = vlaneseq
  %v514 = vshrl.u32 %v513, 7
  %v515 = vsub.s32 %v512, %v514
  %v516 = vrot.slane %v508, %v515
  %v518 = vunpack.c.l.s4 1983009808
  %v519 = vunpack.c.0.s8 %v518
  %v520 = vlaneseq
  %v521 = vshrl.u32 %v520, 7
  %v522 = vsub.s32 %v519, %v521
  %v523 = vrot.slane %v509, %v522
  %v524 = vcombine.low %v516, %v523
  %v525 = vcombine.low %v199, %v208
  %v526 = vcombine.low %v217, %v226
  %v528 = vunpack.c.l.s4 1983009808
  %v529 = vunpack.c.0.s8 %v528
  %v530 = vlaneseq
  %v531 = vshrl.u32 %v530, 7
  %v532 = vsub.s32 %v529, %v531
  %v533 = vrot.slane %v525, %v532
  %v535 = vunpack.c.l.s4 1983009808
  %v536 = vunpack.c.0.s8 %v535
  %v537 = vlaneseq
  %v538 = vshrl.u32 %v537, 7
  %v539 = vsub.s32 %v536, %v538
  %v540 = vrot.slane %v526, %v539
  %v541 = vcombine.low %v533, %v540
  %v542 = vcombine.low %v235, %v244
  %v543 = vcombine.low %v253, %v262
  %v545 = vunpack.c.l.s4 1983009808
  %v546 = vunpack.c.0.s8 %v545
  %v547 = vlaneseq
  %v548 = vshrl.u32 %v547, 7
  %v549 = vsub.s32 %v546, %v548
  %v550 = vrot.slane %v542, %v549
  %v552 = vunpack.c.l.s4 1983009808
  %v553 = vunpack.c.0.s8 %v552
  %v554 = vlaneseq
  %v555 = vshrl.u32 %v554, 7
  %v556 = vsub.s32 %v553, %v555
  %v557 = vrot.slane %v543, %v556
  %v558 = vcombine.low %v550, %v557
  %v559 = vcombine.low %v271, %v280
  %v560 = vcombine.low %v289, %v298
  %v562 = vunpack.c.l.s4 1983009808
  %v563 = vunpack.c.0.s8 %v562
  %v564 = vlaneseq
  %v565 = vshrl.u32 %v564, 7
  %v566 = vsub.s32 %v563, %v565
  %v567 = vrot.slane %v559, %v566
  %v569 = vunpack.c.l.s4 1983009808
  %v570 = vunpack.c.0.s8 %v569
  %v571 = vlaneseq
  %v572 = vshrl.u32 %v571, 7
  %v573 = vsub.s32 %v570, %v572
  %v574 = vrot.slane %v560, %v573
  %v575 = vcombine.low %v567, %v574
  %v576 = vcombine.low %v307, %v316
  %v577 = vcombine.low %v325, %v334
  %v579 = vunpack.c.l.s4 1983009808
  %v580 = vunpack.c.0.s8 %v579
  %v581 = vlaneseq
  %v582 = vshrl.u32 %v581, 7
  %v583 = vsub.s32 %v580, %v582
  %v584 = vrot.slane %v576, %v583
  %v586 = vunpack.c.l.s4 1983009808
  %v587 = vunpack.c.0.s8 %v586
  %v588 = vlaneseq
  %v589 = vshrl.u32 %v588, 7
  %v590 = vsub.s32 %v587, %v589
  %v591 = vrot.slane %v577, %v590
  %v592 = vcombine.low %v584, %v591
  %v593 = vcombine.low %v343, %v352
  %v594 = vcombine.low %v361, %v370
  %v596 = vunpack.c.l.s4 1983009808
  %v597 = vunpack.c.0.s8 %v596
  %v598 = vlaneseq
  %v599 = vshrl.u32 %v598, 7
  %v600 = vsub.s32 %v597, %v599
  %v601 = vrot.slane %v593, %v600
  %v603 = vunpack.c.l.s4 1983009808
  %v604 = vunpack.c.0.s8 %v603
  %v605 = vlaneseq
  %v606 = vshrl.u32 %v605, 7
  %v607 = vsub.s32 %v604, %v606
  %v608 = vrot.slane %v594, %v607
  %v609 = vcombine.low %v601, %v608
  %v610 = vcombine.low %v379, %v388
  %v611 = vcombine.low %v397, %v406
  %v613 = vunpack.c.l.s4 1983009808
  %v614 = vunpack.c.0.s8 %v613
  %v615 = vlaneseq
  %v616 = vshrl.u32 %v615, 7
  %v617 = vsub.s32 %v614, %v616
  %v618 = vrot.slane %v610, %v617
  %v620 = vunpack.c.l.s4 1983009808
  %v621 = vunpack.c.0.s8 %v620
  %v622 = vlaneseq
  %v623 = vshrl.u32 %v622, 7
  %v624 = vsub.s32 %v621, %v623
  %v625 = vrot.slane %v611, %v624
  %v626 = vcombine.low %v618, %v625
  %v627 = vcombine.low %v415, %v424
  %v628 = vcombine.low %v433, %v442
  %v630 = vunpack.c.l.s4 1983009808
  %v631 = vunpack.c.0.s8 %v630
  %v632 = vlaneseq
  %v633 = vshrl.u32 %v632, 7
  %v634 = vsub.s32 %v631, %v633
  %v635 = vrot.slane %v627, %v634
  %v637 = vunpack.c.l.s4 1983009808
  %v638 = vunpack.c.0.s8 %v637
  %v639 = vlaneseq
  %v640 = vshrl.u32 %v639, 7
  %v641 = vsub.s32 %v638, %v640
  %v642 = vrot.slane %v628, %v641
  %v643 = vcombine.low %v635, %v642
  %v644 = vcombine.low %v164, %v173
  %v645 = vcombine.low %v182, %v191
  %v647 = vunpack.c.l.s4 1983009808
  %v648 = vunpack.c.0.s8 %v647
  %v649 = vlaneseq
  %v650 = vshrl.u32 %v649, 7
  %v651 = vsub.s32 %v648, %v650
  %v652 = vrot.slane %v644, %v651
  %v654 = vunpack.c.l.s4 1983009808
  %v655 = vunpack.c.0.s8 %v654
  %v656 = vlaneseq
  %v657 = vshrl.u32 %v656, 7
  %v658 = vsub.s32 %v655, %v657
  %v659 = vrot.slane %v645, %v658
  %v660 = vcombine.low %v652, %v659
  %v661 = vcombine.low %v200, %v209
  %v662 = vcombine.low %v218, %v227
  %v664 = vunpack.c.l.s4 1983009808
  %v665 = vunpack.c.0.s8 %v664
  %v666 = vlaneseq
  %v667 = vshrl.u32 %v666, 7
  %v668 = vsub.s32 %v665, %v667
  %v669 = vrot.slane %v661, %v668
  %v671 = vunpack.c.l.s4 1983009808
  %v672 = vunpack.c.0.s8 %v671
  %v673 = vlaneseq
  %v674 = vshrl.u32 %v673, 7
  %v675 = vsub.s32 %v672, %v674
  %v676 = vrot.slane %v662, %v675
  %v677 = vcombine.low %v669, %v676
  %v678 = vcombine.low %v236, %v245
  %v679 = vcombine.low %v254, %v263
  %v681 = vunpack.c.l.s4 1983009808
  %v682 = vunpack.c.0.s8 %v681
  %v683 = vlaneseq
  %v684 = vshrl.u32 %v683, 7
  %v685 = vsub.s32 %v682, %v684
  %v686 = vrot.slane %v678, %v685
  %v688 = vunpack.c.l.s4 1983009808
  %v689 = vunpack.c.0.s8 %v688
  %v690 = vlaneseq
  %v691 = vshrl.u32 %v690, 7
  %v692 = vsub.s32 %v689, %v691
  %v693 = vrot.slane %v679, %v692
  %v694 = vcombine.low %v686, %v693
  %v695 = vcombine.low %v272, %v281
  %v696 = vcombine.low %v290, %v299
  %v698 = vunpack.c.l.s4 1983009808
  %v699 = vunpack.c.0.s8 %v698
  %v700 = vlaneseq
  %v701 = vshrl.u32 %v700, 7
  %v702 = vsub.s32 %v699, %v701
  %v703 = vrot.slane %v695, %v702
  %v705 = vunpack.c.l.s4 1983009808
  %v706 = vunpack.c.0.s8 %v705
  %v707 = vlaneseq
  %v708 = vshrl.u32 %v707, 7
  %v709 = vsub.s32 %v706, %v708
  %v710 = vrot.slane %v696, %v709
  %v711 = vcombine.low %v703, %v710
  %v712 = vcombine.low %v308, %v317
  %v713 = vcombine.low %v326, %v335
  %v715 = vunpack.c.l.s4 1983009808
  %v716 = vunpack.c.0.s8 %v715
  %v717 = vlaneseq
  %v718 = vshrl.u32 %v717, 7
  %v719 = vsub.s32 %v716, %v718
  %v720 = vrot.slane %v712, %v719
  %v722 = vunpack.c.l.s4 1983009808
  %v723 = vunpack.c.0.s8 %v722
  %v724 = vlaneseq
  %v725 = vshrl.u32 %v724, 7
  %v726 = vsub.s32 %v723, %v725
  %v727 = vrot.slane %v713, %v726
  %v728 = vcombine.low %v720, %v727
  %v729 = vcombine.low %v344, %v353
  %v730 = vcombine.low %v362, %v371
  %v732 = vunpack.c.l.s4 1983009808
  %v733 = vunpack.c.0.s8 %v732
  %v734 = vlaneseq
  %v735 = vshrl.u32 %v734, 7
  %v736 = vsub.s32 %v733, %v735
  %v737 = vrot.slane %v729, %v736
  %v739 = vunpack.c.l.s4 1983009808
  %v740 = vunpack.c.0.s8 %v739
  %v741 = vlaneseq
  %v742 = vshrl.u32 %v741, 7
  %v743 = vsub.s32 %v740, %v742
  %v744 = vrot.slane %v730, %v743
  %v745 = vcombine.low %v737, %v744
  %v746 = vcombine.low %v380, %v389
  %v747 = vcombine.low %v398, %v407
  %v749 = vunpack.c.l.s4 1983009808
  %v750 = vunpack.c.0.s8 %v749
  %v751 = vlaneseq
  %v752 = vshrl.u32 %v751, 7
  %v753 = vsub.s32 %v750, %v752
  %v754 = vrot.slane %v746, %v753
  %v756 = vunpack.c.l.s4 1983009808
  %v757 = vunpack.c.0.s8 %v756
  %v758 = vlaneseq
  %v759 = vshrl.u32 %v758, 7
  %v760 = vsub.s32 %v757, %v759
  %v761 = vrot.slane %v747, %v760
  %v762 = vcombine.low %v754, %v761
  %v763 = vcombine.low %v416, %v425
  %v764 = vcombine.low %v434, %v443
  %v766 = vunpack.c.l.s4 1983009808
  %v767 = vunpack.c.0.s8 %v766
  %v768 = vlaneseq
  %v769 = vshrl.u32 %v768, 7
  %v770 = vsub.s32 %v767, %v769
  %v771 = vrot.slane %v763, %v770
  %v773 = vunpack.c.l.s4 1983009808
  %v774 = vunpack.c.0.s8 %v773
  %v775 = vlaneseq
  %v776 = vshrl.u32 %v775, 7
  %v777 = vsub.s32 %v774, %v776
  %v778 = vrot.slane %v764, %v777
  %v779 = vcombine.low %v771, %v778
  %vm796 = vcmask 130048
  %v797 = vsel %vm796, %v524, 0.0
  %798 = vadd.xlane.f32.xlu0 %v797
  %v799 = vpop.xlane.xlu0 %798
  %v800 = vsel %vm796, %v541, 0.0
  %801 = vadd.xlane.f32.xlu0 %v800
  %v802 = vpop.xlane.xlu0 %801
  %v803 = vsel %vm796, %v558, 0.0
  %804 = vadd.xlane.f32.xlu0 %v803
  %v805 = vpop.xlane.xlu0 %804
  %v806 = vsel %vm796, %v575, 0.0
  %807 = vadd.xlane.f32.xlu0 %v806
  %v808 = vpop.xlane.xlu0 %807
  %v809 = vsel %vm796, %v592, 0.0
  %810 = vadd.xlane.f32.xlu0 %v809
  %v811 = vpop.xlane.xlu0 %810
  %v812 = vsel %vm796, %v609, 0.0
  %813 = vadd.xlane.f32.xlu0 %v812
  %v814 = vpop.xlane.xlu0 %813
  %v815 = vsel %vm796, %v626, 0.0
  %816 = vadd.xlane.f32.xlu0 %v815
  %v817 = vpop.xlane.xlu0 %816
  %v818 = vsel %vm796, %v643, 0.0
  %819 = vadd.xlane.f32.xlu0 %v818
  %v820 = vpop.xlane.xlu0 %819
  %v821 = vsel %vm796, %v660, 0.0
  %822 = vadd.xlane.f32.xlu0 %v821
  %v823 = vpop.xlane.xlu0 %822
  %v824 = vsel %vm796, %v677, 0.0
  %825 = vadd.xlane.f32.xlu0 %v824
  %v826 = vpop.xlane.xlu0 %825
  %v827 = vsel %vm796, %v694, 0.0
  %828 = vadd.xlane.f32.xlu0 %v827
  %v829 = vpop.xlane.xlu0 %828
  %v830 = vsel %vm796, %v711, 0.0
  %831 = vadd.xlane.f32.xlu0 %v830
  %v832 = vpop.xlane.xlu0 %831
  %v833 = vsel %vm796, %v728, 0.0
  %834 = vadd.xlane.f32.xlu0 %v833
  %v835 = vpop.xlane.xlu0 %834
  %v836 = vsel %vm796, %v745, 0.0
  %837 = vadd.xlane.f32.xlu0 %v836
  %v838 = vpop.xlane.xlu0 %837
  %v839 = vsel %vm796, %v762, 0.0
  %840 = vadd.xlane.f32.xlu0 %v839
  %v841 = vpop.xlane.xlu0 %840
  %v842 = vsel %vm796, %v779, 0.0
  %843 = vadd.xlane.f32.xlu0 %v842
  %v844 = vpop.xlane.xlu0 %843
  %v845 = vmul.f32 %v799, 0.0625
  %v846 = vmul.f32 %v802, 0.0625
  %v847 = vmul.f32 %v805, 0.0625
  %v848 = vmul.f32 %v808, 0.0625
  %v849 = vmul.f32 %v811, 0.0625
  %v850 = vmul.f32 %v814, 0.0625
  %v851 = vmul.f32 %v817, 0.0625
  %v852 = vmul.f32 %v820, 0.0625
  %v853 = vmul.f32 %v823, 0.0625
  %v854 = vmul.f32 %v826, 0.0625
  %v855 = vmul.f32 %v829, 0.0625
  %v856 = vmul.f32 %v832, 0.0625
  %v857 = vmul.f32 %v835, 0.0625
  %v858 = vmul.f32 %v838, 0.0625
  %v859 = vmul.f32 %v841, 0.0625
  %v860 = vmul.f32 %v844, 0.0625
  %v877 = vlaneseq
  %v878 = vand.u32 %v877, 127
  %v879 = vlaneseq
  %v880 = vshrl.u32 %v879, 7
  %v881 = vsub.s32 %v878, %v880
  %v882 = vrot.slane %v845, %v881
  %v883 = vadd.s32 %v878, 4294967288
  %v884 = vlaneseq
  %v885 = vshrl.u32 %v884, 7
  %v886 = vsub.s32 %v883, %v885
  %v887 = vrot.slane %v846, %v886
  %vm888 = vcmask 130112
  %v889 = vsel %vm888, %v887, %v882
  %v890 = vadd.s32 %v878, 4294967280
  %v891 = vlaneseq
  %v892 = vshrl.u32 %v891, 7
  %v893 = vsub.s32 %v890, %v892
  %v894 = vrot.slane %v847, %v893
  %vm895 = vcmask 195712
  %v896 = vsel %vm895, %v894, %v889
  %v897 = vadd.s32 %v878, 4294967272
  %v898 = vlaneseq
  %v899 = vshrl.u32 %v898, 7
  %v900 = vsub.s32 %v897, %v899
  %v901 = vrot.slane %v848, %v900
  %vm902 = vcmask 261312
  %v903 = vsel %vm902, %v901, %v896
  %v904 = vadd.s32 %v878, 4294967264
  %v905 = vlaneseq
  %v906 = vshrl.u32 %v905, 7
  %v907 = vsub.s32 %v904, %v906
  %v908 = vrot.slane %v849, %v907
  %vm909 = vcmask 326912
  %v910 = vsel %vm909, %v908, %v903
  %v911 = vadd.s32 %v878, 4294967256
  %v912 = vlaneseq
  %v913 = vshrl.u32 %v912, 7
  %v914 = vsub.s32 %v911, %v913
  %v915 = vrot.slane %v850, %v914
  %vm916 = vcmask 392512
  %v917 = vsel %vm916, %v915, %v910
  %v918 = vadd.s32 %v878, 4294967248
  %v919 = vlaneseq
  %v920 = vshrl.u32 %v919, 7
  %v921 = vsub.s32 %v918, %v920
  %v922 = vrot.slane %v851, %v921
  %vm923 = vcmask 458112
  %v924 = vsel %vm923, %v922, %v917
  %v925 = vadd.s32 %v878, 4294967240
  %v926 = vlaneseq
  %v927 = vshrl.u32 %v926, 7
  %v928 = vsub.s32 %v925, %v927
  %v929 = vrot.slane %v852, %v928
  %vm930 = vcmask 523712
  %v931 = vsel %vm930, %v929, %v924
  %v932 = vlaneseq
  %v933 = vshrl.u32 %v932, 7
  %v934 = vsub.s32 %v878, %v933
  %v935 = vrot.slane %v853, %v934
  %v936 = vlaneseq
  %v937 = vshrl.u32 %v936, 7
  %v938 = vsub.s32 %v883, %v937
  %v939 = vrot.slane %v854, %v938
  %v940 = vsel %vm888, %v939, %v935
  %v941 = vlaneseq
  %v942 = vshrl.u32 %v941, 7
  %v943 = vsub.s32 %v890, %v942
  %v944 = vrot.slane %v855, %v943
  %v945 = vsel %vm895, %v944, %v940
  %v946 = vlaneseq
  %v947 = vshrl.u32 %v946, 7
  %v948 = vsub.s32 %v897, %v947
  %v949 = vrot.slane %v856, %v948
  %v950 = vsel %vm902, %v949, %v945
  %v951 = vlaneseq
  %v952 = vshrl.u32 %v951, 7
  %v953 = vsub.s32 %v904, %v952
  %v954 = vrot.slane %v857, %v953
  %v955 = vsel %vm909, %v954, %v950
  %v956 = vlaneseq
  %v957 = vshrl.u32 %v956, 7
  %v958 = vsub.s32 %v911, %v957
  %v959 = vrot.slane %v858, %v958
  %v960 = vsel %vm916, %v959, %v955
  %v961 = vlaneseq
  %v962 = vshrl.u32 %v961, 7
  %v963 = vsub.s32 %v918, %v962
  %v964 = vrot.slane %v859, %v963
  %v965 = vsel %vm923, %v964, %v960
  %v966 = vlaneseq
  %v967 = vshrl.u32 %v966, 7
  %v968 = vsub.s32 %v925, %v967
  %v969 = vrot.slane %v860, %v968
  %v970 = vsel %vm930, %v969, %v965
  %vm971 = vcmask 1041409
  %v972 = vsel %vm971, %v970, %v931
  %vm974 = vcmask 517120
  %975 = vst.msk [vmem:[#allocation2] sm:$0x3] %vm974, %v972
  %v976 = vld [vmem:[#allocation2] sm:$0x3]
  %v977 = vld [vmem:[%s1] sm:$0xff]
  %v978 = vld [vmem:[%s1 + $0x8] sm:$0xff]
  %v979 = vld [vmem:[%s1 + $0x10] sm:$0xff]
  %v980 = vld [vmem:[%s1 + $0x18] sm:$0xff]
  %v981 = vld [vmem:[%s1 + $0x20] sm:$0xff]
  %v982 = vld [vmem:[%s1 + $0x28] sm:$0xff]
  %v983 = vld [vmem:[%s1 + $0x30] sm:$0xff]
  %v984 = vld [vmem:[%s1 + $0x38] sm:$0xff]
  %vm985 = vcmask 523264
  %v987 = vsel %vm985, %v976, 0
  %989 = vmatprep.subr.mxu0 0.0
  %990 = vmatpush1.msra.mxu0 0.0
  %991 = vmatprep.subr.mxu0 0.0
  %992 = vmatpush1.msra.mxu0 0.0
  %993 = vmatprep.subr.mxu0 0.0
  %994 = vmatpush1.msra.mxu0 0.0
  %995 = vmatprep.subr.mxu0 0.0
  %996 = vmatpush1.msra.mxu0 0.0
  %997 = vmatprep.subr.mxu0 0.0
  %998 = vmatpush1.msra.mxu0 0.0
  %999 = vmatprep.subr.mxu0 0.0
  %1000 = vmatpush1.msra.mxu0 0.0
  %1001 = vmatprep.subr.mxu0 0.0
  %1002 = vmatpush1.msra.mxu0 0.0
  %1003 = vmatprep.subr.mxu0 0.0
  %1004 = vmatpush1.msra.mxu0 0.0
  %1005 = vmatprep.subr.mxu0 0.0
  %1006 = vmatpush1.msra.mxu0 %v984
  %1007 = vmatprep.subr.mxu0 0.0
  %1008 = vmatpush1.msra.mxu0 %v983
  %1009 = vmatprep.subr.mxu0 0.0
  %1010 = vmatpush1.msra.mxu0 %v982
  %1011 = vmatprep.subr.mxu0 0.0
  %1012 = vmatpush1.msra.mxu0 %v981
  %1013 = vmatprep.subr.mxu0 0.0
  %1014 = vmatpush1.msra.mxu0 %v980
  %1015 = vmatprep.subr.mxu0 0.0
  %1016 = vmatpush1.msra.mxu0 %v979
  %1017 = vmatprep.subr.mxu0 0.0
  %1018 = vmatpush1.msra.mxu0 %v978
  %1019 = vmatprep.subr.mxu0 0.0
  %1020 = vmatpush1.msra.mxu0 %v977
  %1021 = vmatprep.subr.mxu0 0.0
  %1022 = vmatpush2.msra.mxu0 0.0
  %1023 = vmatprep.subr.mxu0 0.0
  %1024 = vmatpush2.msra.mxu0 0.0
  %1025 = vmatprep.subr.mxu0 0.0
  %1026 = vmatpush2.msra.mxu0 0.0
  %1027 = vmatprep.subr.mxu0 0.0
  %1028 = vmatpush2.msra.mxu0 0.0
  %1029 = vmatprep.subr.mxu0 0.0
  %1030 = vmatpush2.msra.mxu0 0.0
  %1031 = vmatprep.subr.mxu0 0.0
  %1032 = vmatpush2.msra.mxu0 0.0
  %1033 = vmatprep.subr.mxu0 0.0
  %1034 = vmatpush2.msra.mxu0 0.0
  %1035 = vmatprep.subr.mxu0 0.0
  %1036 = vmatpush2.msra.mxu0 0.0
  %1037 = vmatprep.subr.mxu0 0.0
  %1038 = vmatpush2.msra.mxu0 0.0
  %1039 = vmatprep.subr.mxu0 0.0
  %1040 = vmatpush2.msra.mxu0 0.0
  %1041 = vmatprep.subr.mxu0 0.0
  %1042 = vmatpush2.msra.mxu0 0.0
  %1043 = vmatprep.subr.mxu0 0.0
  %1044 = vmatpush2.msra.mxu0 0.0
  %1045 = vmatprep.subr.mxu0 0.0
  %1046 = vmatpush2.msra.mxu0 0.0
  %1047 = vmatprep.subr.mxu0 0.0
  %1048 = vmatpush2.msra.mxu0 0.0
  %1049 = vmatprep.subr.mxu0 0.0
  %1050 = vmatpush2.msra.mxu0 0.0
  %1051 = vmatprep.subr.mxu0 0.0
  %1052 = vmatpush2.msra.mxu0 0.0
  %1053 = vmatprep.mubr.f32.mxu0 0.0
  %1054 = vmatmul.mubr.f32.gmra.mxu0 %v987
  %v1055 = vpop.f32.mrf.mxu0
  %v1056 = vadd.f32 0.0, %v1055
  %v1057 = vpop.f32.mrf.mxu0
  %1058 = vdwg.mxu0
  %v1059 = vmax.f32 %v1056, 0.0
  %v1060 = vld [vmem:[%s2] sm:$0xf]
  %vm1061 = vcmask 31744
  %v1063 = vsel %vm1061, %v1059, 0
  %vm1065 = vcmask 1043456
  %v1067 = vsel %vm1065, %v1060, 0
  %1069 = vmatprep.subr.mxu0 0.0
  %1070 = vmatpush1.msra.mxu0 0.0
  %1071 = vmatprep.subr.mxu0 0.0
  %1072 = vmatpush1.msra.mxu0 0.0
  %1073 = vmatprep.subr.mxu0 0.0
  %1074 = vmatpush1.msra.mxu0 0.0
  %1075 = vmatprep.subr.mxu0 0.0
  %1076 = vmatpush1.msra.mxu0 0.0
  %1077 = vmatprep.subr.mxu0 0.0
  %1078 = vmatpush1.msra.mxu0 0.0
  %1079 = vmatprep.subr.mxu0 0.0
  %1080 = vmatpush1.msra.mxu0 0.0
  %1081 = vmatprep.subr.mxu0 0.0
  %1082 = vmatpush1.msra.mxu0 0.0
  %1083 = vmatprep.subr.mxu0 0.0
  %1084 = vmatpush1.msra.mxu0 0.0
  %1085 = vmatprep.subr.mxu0 0.0
  %1086 = vmatpush1.msra.mxu0 0.0
  %1087 = vmatprep.subr.mxu0 0.0
  %1088 = vmatpush1.msra.mxu0 0.0
  %1089 = vmatprep.subr.mxu0 0.0
  %1090 = vmatpush1.msra.mxu0 0.0
  %1091 = vmatprep.subr.mxu0 0.0
  %1092 = vmatpush1.msra.mxu0 0.0
  %1093 = vmatprep.subr.mxu0 0.0
  %1094 = vmatpush1.msra.mxu0 0.0
  %1095 = vmatprep.subr.mxu0 0.0
  %1096 = vmatpush1.msra.mxu0 0.0
  %1097 = vmatprep.subr.mxu0 0.0
  %1098 = vmatpush1.msra.mxu0 0.0
  %1099 = vmatprep.subr.mxu0 0.0
  %1100 = vmatpush1.msra.mxu0 %v1067
  %1101 = vmatprep.subr.mxu0 0.0
  %1102 = vmatpush2.msra.mxu0 0.0
  %1103 = vmatprep.subr.mxu0 0.0
  %1104 = vmatpush2.msra.mxu0 0.0
  %1105 = vmatprep.subr.mxu0 0.0
  %1106 = vmatpush2.msra.mxu0 0.0
  %1107 = vmatprep.subr.mxu0 0.0
  %1108 = vmatpush2.msra.mxu0 0.0
  %1109 = vmatprep.subr.mxu0 0.0
  %1110 = vmatpush2.msra.mxu0 0.0
  %1111 = vmatprep.subr.mxu0 0.0
  %1112 = vmatpush2.msra.mxu0 0.0
  %1113 = vmatprep.subr.mxu0 0.0
  %1114 = vmatpush2.msra.mxu0 0.0
  %1115 = vmatprep.subr.mxu0 0.0
  %1116 = vmatpush2.msra.mxu0 0.0
  %1117 = vmatprep.subr.mxu0 0.0
  %1118 = vmatpush2.msra.mxu0 0.0
  %1119 = vmatprep.subr.mxu0 0.0
  %1120 = vmatpush2.msra.mxu0 0.0
  %1121 = vmatprep.subr.mxu0 0.0
  %1122 = vmatpush2.msra.mxu0 0.0
  %1123 = vmatprep.subr.mxu0 0.0
  %1124 = vmatpush2.msra.mxu0 0.0
  %1125 = vmatprep.subr.mxu0 0.0
  %1126 = vmatpush2.msra.mxu0 0.0
  %1127 = vmatprep.subr.mxu0 0.0
  %1128 = vmatpush2.msra.mxu0 0.0
  %1129 = vmatprep.subr.mxu0 0.0
  %1130 = vmatpush2.msra.mxu0 0.0
  %1131 = vmatprep.subr.mxu0 0.0
  %1132 = vmatpush2.msra.mxu0 0.0
  %1133 = vmatprep.mubr.f32.mxu0 0.0
  %1134 = vmatmul.mubr.f32.gmra.mxu0 %v1063
  %v1135 = vpop.f32.mrf.mxu0
  %v1136 = vadd.f32 0.0, %v1135
  %v1137 = vpop.f32.mrf.mxu0
  %1138 = vdwg.mxu0
  %v1139 = vxor.u32 %v1136, 2147483648
  %v1140 = vmul.f32 %v1139, 1.442695
  %v1141 = vpow.pop %v1140
  %v1142 = vadd.f32 %v1141, 1.0
  %v1143 = vrcp.pop %v1142
  %v1144 = vmul.f32 1.0, %v1143
  %1145 = vst.msk [vmem:[#allocation2] sm:$0x3] %vm974, %v1144
  %v1146 = vld [vmem:[%s0] sm:$0xff]
  %v1147 = vld [vmem:[%s0 + $0x8] sm:$0xff]
  %v1149 = vrot.slane %v1146, 2
  %1151 = vrot.lane.b32.xlu0 %v1146, 112
  %v1152 = vpop.permute.xlu0 %1151
  %v1153 = vrot.slane %v1152, 2
  %1155 = vrot.lane.b32.xlu0 %v1146, 96
  %v1156 = vpop.permute.xlu0 %1155
  %v1157 = vrot.slane %v1156, 2
  %1159 = vrot.lane.b32.xlu0 %v1146, 80
  %v1160 = vpop.permute.xlu0 %1159
  %v1161 = vrot.slane %v1160, 2
  %1163 = vrot.lane.b32.xlu0 %v1146, 64
  %v1164 = vpop.permute.xlu0 %1163
  %v1165 = vrot.slane %v1164, 2
  %1167 = vrot.lane.b32.xlu0 %v1146, 48
  %v1168 = vpop.permute.xlu0 %1167
  %v1169 = vrot.slane %v1168, 2
  %1171 = vrot.lane.b32.xlu0 %v1146, 32
  %v1172 = vpop.permute.xlu0 %1171
  %v1173 = vrot.slane %v1172, 2
  %1175 = vrot.lane.b32.xlu0 %v1146, 16
  %v1176 = vpop.permute.xlu0 %1175
  %v1177 = vrot.slane %v1176, 2
  %v1179 = vrot.slane %v1146, 4
  %v1181 = vrot.slane %v1152, 4
  %v1183 = vrot.slane %v1156, 4
  %v1185 = vrot.slane %v1160, 4
  %v1187 = vrot.slane %v1164, 4
  %v1189 = vrot.slane %v1168, 4
  %v1191 = vrot.slane %v1172, 4
  %v1193 = vrot.slane %v1176, 4
  %v1195 = vrot.slane %v1146, 6
  %v1197 = vrot.slane %v1152, 6
  %v1199 = vrot.slane %v1156, 6
  %v1201 = vrot.slane %v1160, 6
  %v1203 = vrot.slane %v1164, 6
  %v1205 = vrot.slane %v1168, 6
  %v1207 = vrot.slane %v1172, 6
  %v1209 = vrot.slane %v1176, 6
  %v1212 = vrot.slane %v1147, 2
  %1214 = vrot.lane.b32.xlu0 %v1147, 112
  %v1215 = vpop.permute.xlu0 %1214
  %v1216 = vrot.slane %v1215, 2
  %1218 = vrot.lane.b32.xlu0 %v1147, 96
  %v1219 = vpop.permute.xlu0 %1218
  %v1220 = vrot.slane %v1219, 2
  %1222 = vrot.lane.b32.xlu0 %v1147, 80
  %v1223 = vpop.permute.xlu0 %1222
  %v1224 = vrot.slane %v1223, 2
  %1226 = vrot.lane.b32.xlu0 %v1147, 64
  %v1227 = vpop.permute.xlu0 %1226
  %v1228 = vrot.slane %v1227, 2
  %1230 = vrot.lane.b32.xlu0 %v1147, 48
  %v1231 = vpop.permute.xlu0 %1230
  %v1232 = vrot.slane %v1231, 2
  %1234 = vrot.lane.b32.xlu0 %v1147, 32
  %v1235 = vpop.permute.xlu0 %1234
  %v1236 = vrot.slane %v1235, 2
  %1238 = vrot.lane.b32.xlu0 %v1147, 16
  %v1239 = vpop.permute.xlu0 %1238
  %v1240 = vrot.slane %v1239, 2
  %v1242 = vrot.slane %v1147, 4
  %v1244 = vrot.slane %v1215, 4
  %v1246 = vrot.slane %v1219, 4
  %v1248 = vrot.slane %v1223, 4
  %v1250 = vrot.slane %v1227, 4
  %v1252 = vrot.slane %v1231, 4
  %v1254 = vrot.slane %v1235, 4
  %v1256 = vrot.slane %v1239, 4
  %v1258 = vrot.slane %v1147, 6
  %v1260 = vrot.slane %v1215, 6
  %v1262 = vrot.slane %v1219, 6
  %v1264 = vrot.slane %v1223, 6
  %v1266 = vrot.slane %v1227, 6
  %v1268 = vrot.slane %v1231, 6
  %v1270 = vrot.slane %v1235, 6
  %v1272 = vrot.slane %v1239, 6
  %v1288 = vcombine.low %v1146, %v1152
  %v1290 = vunpack.c.l.s4 1934713408
  %v1291 = vunpack.c.0.s8 %v1290
  %v1292 = vlaneseq
  %v1293 = vshrl.u32 %v1292, 7
  %v1294 = vsub.s32 %v1291, %v1293
  %v1295 = vrot.slane %v1288, %v1294
  %v1296 = vcombine.high %v1295, 0.0
  %v1297 = vcombine.low %v1156, %v1160
  %v1299 = vunpack.c.l.s4 1934713408
  %v1300 = vunpack.c.0.s8 %v1299
  %v1301 = vlaneseq
  %v1302 = vshrl.u32 %v1301, 7
  %v1303 = vsub.s32 %v1300, %v1302
  %v1304 = vrot.slane %v1297, %v1303
  %v1305 = vcombine.high %v1304, 0.0
  %v1306 = vcombine.low %v1164, %v1168
  %v1308 = vunpack.c.l.s4 1934713408
  %v1309 = vunpack.c.0.s8 %v1308
  %v1310 = vlaneseq
  %v1311 = vshrl.u32 %v1310, 7
  %v1312 = vsub.s32 %v1309, %v1311
  %v1313 = vrot.slane %v1306, %v1312
  %v1314 = vcombine.high %v1313, 0.0
  %v1315 = vcombine.low %v1172, %v1176
  %v1317 = vunpack.c.l.s4 1934713408
  %v1318 = vunpack.c.0.s8 %v1317
  %v1319 = vlaneseq
  %v1320 = vshrl.u32 %v1319, 7
  %v1321 = vsub.s32 %v1318, %v1320
  %v1322 = vrot.slane %v1315, %v1321
  %v1323 = vcombine.high %v1322, 0.0
  %v1324 = vcombine.low %v1149, %v1153
  %v1326 = vunpack.c.l.s4 1934713408
  %v1327 = vunpack.c.0.s8 %v1326
  %v1328 = vlaneseq
  %v1329 = vshrl.u32 %v1328, 7
  %v1330 = vsub.s32 %v1327, %v1329
  %v1331 = vrot.slane %v1324, %v1330
  %v1332 = vcombine.high %v1331, 0.0
  %v1333 = vcombine.low %v1157, %v1161
  %v1335 = vunpack.c.l.s4 1934713408
  %v1336 = vunpack.c.0.s8 %v1335
  %v1337 = vlaneseq
  %v1338 = vshrl.u32 %v1337, 7
  %v1339 = vsub.s32 %v1336, %v1338
  %v1340 = vrot.slane %v1333, %v1339
  %v1341 = vcombine.high %v1340, 0.0
  %v1342 = vcombine.low %v1165, %v1169
  %v1344 = vunpack.c.l.s4 1934713408
  %v1345 = vunpack.c.0.s8 %v1344
  %v1346 = vlaneseq
  %v1347 = vshrl.u32 %v1346, 7
  %v1348 = vsub.s32 %v1345, %v1347
  %v1349 = vrot.slane %v1342, %v1348
  %v1350 = vcombine.high %v1349, 0.0
  %v1351 = vcombine.low %v1173, %v1177
  %v1353 = vunpack.c.l.s4 1934713408
  %v1354 = vunpack.c.0.s8 %v1353
  %v1355 = vlaneseq
  %v1356 = vshrl.u32 %v1355, 7
  %v1357 = vsub.s32 %v1354, %v1356
  %v1358 = vrot.slane %v1351, %v1357
  %v1359 = vcombine.high %v1358, 0.0
  %v1360 = vcombine.low %v1179, %v1181
  %v1362 = vunpack.c.l.s4 1934713408
  %v1363 = vunpack.c.0.s8 %v1362
  %v1364 = vlaneseq
  %v1365 = vshrl.u32 %v1364, 7
  %v1366 = vsub.s32 %v1363, %v1365
  %v1367 = vrot.slane %v1360, %v1366
  %v1368 = vcombine.high %v1367, 0.0
  %v1369 = vcombine.low %v1183, %v1185
  %v1371 = vunpack.c.l.s4 1934713408
  %v1372 = vunpack.c.0.s8 %v1371
  %v1373 = vlaneseq
  %v1374 = vshrl.u32 %v1373, 7
  %v1375 = vsub.s32 %v1372, %v1374
  %v1376 = vrot.slane %v1369, %v1375
  %v1377 = vcombine.high %v1376, 0.0
  %v1378 = vcombine.low %v1187, %v1189
  %v1380 = vunpack.c.l.s4 1934713408
  %v1381 = vunpack.c.0.s8 %v1380
  %v1382 = vlaneseq
  %v1383 = vshrl.u32 %v1382, 7
  %v1384 = vsub.s32 %v1381, %v1383
  %v1385 = vrot.slane %v1378, %v1384
  %v1386 = vcombine.high %v1385, 0.0
  %v1387 = vcombine.low %v1191, %v1193
  %v1389 = vunpack.c.l.s4 1934713408
  %v1390 = vunpack.c.0.s8 %v1389
  %v1391 = vlaneseq
  %v1392 = vshrl.u32 %v1391, 7
  %v1393 = vsub.s32 %v1390, %v1392
  %v1394 = vrot.slane %v1387, %v1393
  %v1395 = vcombine.high %v1394, 0.0
  %v1396 = vcombine.low %v1195, %v1197
  %v1398 = vunpack.c.l.s4 1934713408
  %v1399 = vunpack.c.0.s8 %v1398
  %v1400 = vlaneseq
  %v1401 = vshrl.u32 %v1400, 7
  %v1402 = vsub.s32 %v1399, %v1401
  %v1403 = vrot.slane %v1396, %v1402
  %v1404 = vcombine.high %v1403, 0.0
  %v1405 = vcombine.low %v1199, %v1201
  %v1407 = vunpack.c.l.s4 1934713408
  %v1408 = vunpack.c.0.s8 %v1407
  %v1409 = vlaneseq
  %v1410 = vshrl.u32 %v1409, 7
  %v1411 = vsub.s32 %v1408, %v1410
  %v1412 = vrot.slane %v1405, %v1411
  %v1413 = vcombine.high %v1412, 0.0
  %v1414 = vcombine.low %v1203, %v1205
  %v1416 = vunpack.c.l.s4 1934713408
  %v1417 = vunpack.c.0.s8 %v1416
  %v1418 = vlaneseq
  %v1419 = vshrl.u32 %v1418, 7
  %v1420 = vsub.s32 %v1417, %v1419
  %v1421 = vrot.slane %v1414, %v1420
  %v1422 = vcombine.high %v1421, 0.0
  %v1423 = vcombine.low %v1207, %v1209
  %v1425 = vunpack.c.l.s4 1934713408
  %v1426 = vunpack.c.0.s8 %v1425
  %v1427 = vlaneseq
  %v1428 = vshrl.u32 %v1427, 7
  %v1429 = vsub.s32 %v1426, %v1428
  %v1430 = vrot.slane %v1423, %v1429
  %v1431 = vcombine.high %v1430, 0.0
  %v1432 = vcombine.low %v1147, %v1215
  %v1434 = vunpack.c.l.s4 1934713408
  %v1435 = vunpack.c.0.s8 %v1434
  %v1436 = vlaneseq
  %v1437 = vshrl.u32 %v1436, 7
  %v1438 = vsub.s32 %v1435, %v1437
  %v1439 = vrot.slane %v1432, %v1438
  %v1440 = vcombine.high %v1439, 0.0
  %v1441 = vcombine.low %v1219, %v1223
  %v1443 = vunpack.c.l.s4 1934713408
  %v1444 = vunpack.c.0.s8 %v1443
  %v1445 = vlaneseq
  %v1446 = vshrl.u32 %v1445, 7
  %v1447 = vsub.s32 %v1444, %v1446
  %v1448 = vrot.slane %v1441, %v1447
  %v1449 = vcombine.high %v1448, 0.0
  %v1450 = vcombine.low %v1227, %v1231
  %v1452 = vunpack.c.l.s4 1934713408
  %v1453 = vunpack.c.0.s8 %v1452
  %v1454 = vlaneseq
  %v1455 = vshrl.u32 %v1454, 7
  %v1456 = vsub.s32 %v1453, %v1455
  %v1457 = vrot.slane %v1450, %v1456
  %v1458 = vcombine.high %v1457, 0.0
  %v1459 = vcombine.low %v1235, %v1239
  %v1461 = vunpack.c.l.s4 1934713408
  %v1462 = vunpack.c.0.s8 %v1461
  %v1463 = vlaneseq
  %v1464 = vshrl.u32 %v1463, 7
  %v1465 = vsub.s32 %v1462, %v1464
  %v1466 = vrot.slane %v1459, %v1465
  %v1467 = vcombine.high %v1466, 0.0
  %v1468 = vcombine.low %v1212, %v1216
  %v1470 = vunpack.c.l.s4 1934713408
  %v1471 = vunpack.c.0.s8 %v1470
  %v1472 = vlaneseq
  %v1473 = vshrl.u32 %v1472, 7
  %v1474 = vsub.s32 %v1471, %v1473
  %v1475 = vrot.slane %v1468, %v1474
  %v1476 = vcombine.high %v1475, 0.0
  %v1477 = vcombine.low %v1220, %v1224
  %v1479 = vunpack.c.l.s4 1934713408
  %v1480 = vunpack.c.0.s8 %v1479
  %v1481 = vlaneseq
  %v1482 = vshrl.u32 %v1481, 7
  %v1483 = vsub.s32 %v1480, %v1482
  %v1484 = vrot.slane %v1477, %v1483
  %v1485 = vcombine.high %v1484, 0.0
  %v1486 = vcombine.low %v1228, %v1232
  %v1488 = vunpack.c.l.s4 1934713408
  %v1489 = vunpack.c.0.s8 %v1488
  %v1490 = vlaneseq
  %v1491 = vshrl.u32 %v1490, 7
  %v1492 = vsub.s32 %v1489, %v1491
  %v1493 = vrot.slane %v1486, %v1492
  %v1494 = vcombine.high %v1493, 0.0
  %v1495 = vcombine.low %v1236, %v1240
  %v1497 = vunpack.c.l.s4 1934713408
  %v1498 = vunpack.c.0.s8 %v1497
  %v1499 = vlaneseq
  %v1500 = vshrl.u32 %v1499, 7
  %v1501 = vsub.s32 %v1498, %v1500
  %v1502 = vrot.slane %v1495, %v1501
  %v1503 = vcombine.high %v1502, 0.0
  %v1504 = vcombine.low %v1242, %v1244
  %v1506 = vunpack.c.l.s4 1934713408
  %v1507 = vunpack.c.0.s8 %v1506
  %v1508 = vlaneseq
  %v1509 = vshrl.u32 %v1508, 7
  %v1510 = vsub.s32 %v1507, %v1509
  %v1511 = vrot.slane %v1504, %v1510
  %v1512 = vcombine.high %v1511, 0.0
  %v1513 = vcombine.low %v1246, %v1248
  %v1515 = vunpack.c.l.s4 1934713408
  %v1516 = vunpack.c.0.s8 %v1515
  %v1517 = vlaneseq
  %v1518 = vshrl.u32 %v1517, 7
  %v1519 = vsub.s32 %v1516, %v1518
  %v1520 = vrot.slane %v1513, %v1519
  %v1521 = vcombine.high %v1520, 0.0
  %v1522 = vcombine.low %v1250, %v1252
  %v1524 = vunpack.c.l.s4 1934713408
  %v1525 = vunpack.c.0.s8 %v1524
  %v1526 = vlaneseq
  %v1527 = vshrl.u32 %v1526, 7
  %v1528 = vsub.s32 %v1525, %v1527
  %v1529 = vrot.slane %v1522, %v1528
  %v1530 = vcombine.high %v1529, 0.0
  %v1531 = vcombine.low %v1254, %v1256
  %v1533 = vunpack.c.l.s4 1934713408
  %v1534 = vunpack.c.0.s8 %v1533
  %v1535 = vlaneseq
  %v1536 = vshrl.u32 %v1535, 7
  %v1537 = vsub.s32 %v1534, %v1536
  %v1538 = vrot.slane %v1531, %v1537
  %v1539 = vcombine.high %v1538, 0.0
  %v1540 = vcombine.low %v1258, %v1260
  %v1542 = vunpack.c.l.s4 1934713408
  %v1543 = vunpack.c.0.s8 %v1542
  %v1544 = vlaneseq
  %v1545 = vshrl.u32 %v1544, 7
  %v1546 = vsub.s32 %v1543, %v1545
  %v1547 = vrot.slane %v1540, %v1546
  %v1548 = vcombine.high %v1547, 0.0
  %v1549 = vcombine.low %v1262, %v1264
  %v1551 = vunpack.c.l.s4 1934713408
  %v1552 = vunpack.c.0.s8 %v1551
  %v1553 = vlaneseq
  %v1554 = vshrl.u32 %v1553, 7
  %v1555 = vsub.s32 %v1552, %v1554
  %v1556 = vrot.slane %v1549, %v1555
  %v1557 = vcombine.high %v1556, 0.0
  %v1558 = vcombine.low %v1266, %v1268
  %v1560 = vunpack.c.l.s4 1934713408
  %v1561 = vunpack.c.0.s8 %v1560
  %v1562 = vlaneseq
  %v1563 = vshrl.u32 %v1562, 7
  %v1564 = vsub.s32 %v1561, %v1563
  %v1565 = vrot.slane %v1558, %v1564
  %v1566 = vcombine.high %v1565, 0.0
  %v1567 = vcombine.low %v1270, %v1272
  %v1569 = vunpack.c.l.s4 1934713408
  %v1570 = vunpack.c.0.s8 %v1569
  %v1571 = vlaneseq
  %v1572 = vshrl.u32 %v1571, 7
  %v1573 = vsub.s32 %v1570, %v1572
  %v1574 = vrot.slane %v1567, %v1573
  %v1575 = vcombine.high %v1574, 0.0
  %v1576 = vld [vmem:[#allocation2] sm:$0x3]
  %v1577 = vlaneseq
  %v1578 = vshrl.u32 %v1577, 7
  %v1579 = vsub.s32 0, %v1578
  %v1580 = vrot.slane %v1576, %v1579
  %1582 = vbcast.lane.b32.xlu0 %v1580, 256
  %v1583 = vpop.permute.xlu0 %1582
  %s1585 = sor.u32 256, 8
  %1586 = vbcast.lane.b32.xlu0 %v1580, %s1585
  %v1587 = vpop.permute.xlu0 %1586
  %s1589 = sor.u32 256, 16
  %1590 = vbcast.lane.b32.xlu0 %v1580, %s1589
  %v1591 = vpop.permute.xlu0 %1590
  %s1593 = sor.u32 256, 24
  %1594 = vbcast.lane.b32.xlu0 %v1580, %s1593
  %v1595 = vpop.permute.xlu0 %1594
  %s1597 = sor.u32 256, 32
  %1598 = vbcast.lane.b32.xlu0 %v1580, %s1597
  %v1599 = vpop.permute.xlu0 %1598
  %s1601 = sor.u32 256, 40
  %1602 = vbcast.lane.b32.xlu0 %v1580, %s1601
  %v1603 = vpop.permute.xlu0 %1602
  %s1605 = sor.u32 256, 48
  %1606 = vbcast.lane.b32.xlu0 %v1580, %s1605
  %v1607 = vpop.permute.xlu0 %1606
  %s1609 = sor.u32 256, 56
  %1610 = vbcast.lane.b32.xlu0 %v1580, %s1609
  %v1611 = vpop.permute.xlu0 %1610
  %v1612 = vlaneseq
  %v1613 = vshrl.u32 %v1612, 7
  %v1614 = vsub.s32 1, %v1613
  %v1615 = vrot.slane %v1576, %v1614
  %1617 = vbcast.lane.b32.xlu0 %v1615, 256
  %v1618 = vpop.permute.xlu0 %1617
  %s1620 = sor.u32 256, 8
  %1621 = vbcast.lane.b32.xlu0 %v1615, %s1620
  %v1622 = vpop.permute.xlu0 %1621
  %s1624 = sor.u32 256, 16
  %1625 = vbcast.lane.b32.xlu0 %v1615, %s1624
  %v1626 = vpop.permute.xlu0 %1625
  %s1628 = sor.u32 256, 24
  %1629 = vbcast.lane.b32.xlu0 %v1615, %s1628
  %v1630 = vpop.permute.xlu0 %1629
  %s1632 = sor.u32 256, 32
  %1633 = vbcast.lane.b32.xlu0 %v1615, %s1632
  %v1634 = vpop.permute.xlu0 %1633
  %s1636 = sor.u32 256, 40
  %1637 = vbcast.lane.b32.xlu0 %v1615, %s1636
  %v1638 = vpop.permute.xlu0 %1637
  %s1640 = sor.u32 256, 48
  %1641 = vbcast.lane.b32.xlu0 %v1615, %s1640
  %v1642 = vpop.permute.xlu0 %1641
  %s1644 = sor.u32 256, 56
  %1645 = vbcast.lane.b32.xlu0 %v1615, %s1644
  %v1646 = vpop.permute.xlu0 %1645
  %v1664 = vunpack.c.l.s4 269488144
  %v1665 = vunpack.c.0.s8 %v1664
  %v1666 = vlaneseq
  %v1667 = vshrl.u32 %v1666, 7
  %v1668 = vsub.s32 %v1665, %v1667
  %v1669 = vrot.slane %v1583, %v1668
  %v1671 = vunpack.c.l.s4 842150450
  %v1672 = vunpack.c.0.s8 %v1671
  %v1673 = vlaneseq
  %v1674 = vshrl.u32 %v1673, 7
  %v1675 = vsub.s32 %v1672, %v1674
  %v1676 = vrot.slane %v1583, %v1675
  %v1678 = vunpack.c.l.s4 1414812756
  %v1679 = vunpack.c.0.s8 %v1678
  %v1680 = vlaneseq
  %v1681 = vshrl.u32 %v1680, 7
  %v1682 = vsub.s32 %v1679, %v1681
  %v1683 = vrot.slane %v1583, %v1682
  %v1685 = vunpack.c.l.s4 1987475062
  %v1686 = vunpack.c.0.s8 %v1685
  %v1687 = vlaneseq
  %v1688 = vshrl.u32 %v1687, 7
  %v1689 = vsub.s32 %v1686, %v1688
  %v1690 = vrot.slane %v1583, %v1689
  %v1692 = vunpack.c.l.s4 269488144
  %v1693 = vunpack.c.0.s8 %v1692
  %v1694 = vlaneseq
  %v1695 = vshrl.u32 %v1694, 7
  %v1696 = vsub.s32 %v1693, %v1695
  %v1697 = vrot.slane %v1587, %v1696
  %v1699 = vunpack.c.l.s4 842150450
  %v1700 = vunpack.c.0.s8 %v1699
  %v1701 = vlaneseq
  %v1702 = vshrl.u32 %v1701, 7
  %v1703 = vsub.s32 %v1700, %v1702
  %v1704 = vrot.slane %v1587, %v1703
  %v1706 = vunpack.c.l.s4 1414812756
  %v1707 = vunpack.c.0.s8 %v1706
  %v1708 = vlaneseq
  %v1709 = vshrl.u32 %v1708, 7
  %v1710 = vsub.s32 %v1707, %v1709
  %v1711 = vrot.slane %v1587, %v1710
  %v1713 = vunpack.c.l.s4 1987475062
  %v1714 = vunpack.c.0.s8 %v1713
  %v1715 = vlaneseq
  %v1716 = vshrl.u32 %v1715, 7
  %v1717 = vsub.s32 %v1714, %v1716
  %v1718 = vrot.slane %v1587, %v1717
  %v1720 = vunpack.c.l.s4 269488144
  %v1721 = vunpack.c.0.s8 %v1720
  %v1722 = vlaneseq
  %v1723 = vshrl.u32 %v1722, 7
  %v1724 = vsub.s32 %v1721, %v1723
  %v1725 = vrot.slane %v1591, %v1724
  %v1727 = vunpack.c.l.s4 842150450
  %v1728 = vunpack.c.0.s8 %v1727
  %v1729 = vlaneseq
  %v1730 = vshrl.u32 %v1729, 7
  %v1731 = vsub.s32 %v1728, %v1730
  %v1732 = vrot.slane %v1591, %v1731
  %v1734 = vunpack.c.l.s4 1414812756
  %v1735 = vunpack.c.0.s8 %v1734
  %v1736 = vlaneseq
  %v1737 = vshrl.u32 %v1736, 7
  %v1738 = vsub.s32 %v1735, %v1737
  %v1739 = vrot.slane %v1591, %v1738
  %v1741 = vunpack.c.l.s4 1987475062
  %v1742 = vunpack.c.0.s8 %v1741
  %v1743 = vlaneseq
  %v1744 = vshrl.u32 %v1743, 7
  %v1745 = vsub.s32 %v1742, %v1744
  %v1746 = vrot.slane %v1591, %v1745
  %v1748 = vunpack.c.l.s4 269488144
  %v1749 = vunpack.c.0.s8 %v1748
  %v1750 = vlaneseq
  %v1751 = vshrl.u32 %v1750, 7
  %v1752 = vsub.s32 %v1749, %v1751
  %v1753 = vrot.slane %v1595, %v1752
  %v1755 = vunpack.c.l.s4 842150450
  %v1756 = vunpack.c.0.s8 %v1755
  %v1757 = vlaneseq
  %v1758 = vshrl.u32 %v1757, 7
  %v1759 = vsub.s32 %v1756, %v1758
  %v1760 = vrot.slane %v1595, %v1759
  %v1762 = vunpack.c.l.s4 1414812756
  %v1763 = vunpack.c.0.s8 %v1762
  %v1764 = vlaneseq
  %v1765 = vshrl.u32 %v1764, 7
  %v1766 = vsub.s32 %v1763, %v1765
  %v1767 = vrot.slane %v1595, %v1766
  %v1769 = vunpack.c.l.s4 1987475062
  %v1770 = vunpack.c.0.s8 %v1769
  %v1771 = vlaneseq
  %v1772 = vshrl.u32 %v1771, 7
  %v1773 = vsub.s32 %v1770, %v1772
  %v1774 = vrot.slane %v1595, %v1773
  %v1776 = vunpack.c.l.s4 269488144
  %v1777 = vunpack.c.0.s8 %v1776
  %v1778 = vlaneseq
  %v1779 = vshrl.u32 %v1778, 7
  %v1780 = vsub.s32 %v1777, %v1779
  %v1781 = vrot.slane %v1599, %v1780
  %v1783 = vunpack.c.l.s4 842150450
  %v1784 = vunpack.c.0.s8 %v1783
  %v1785 = vlaneseq
  %v1786 = vshrl.u32 %v1785, 7
  %v1787 = vsub.s32 %v1784, %v1786
  %v1788 = vrot.slane %v1599, %v1787
  %v1790 = vunpack.c.l.s4 1414812756
  %v1791 = vunpack.c.0.s8 %v1790
  %v1792 = vlaneseq
  %v1793 = vshrl.u32 %v1792, 7
  %v1794 = vsub.s32 %v1791, %v1793
  %v1795 = vrot.slane %v1599, %v1794
  %v1797 = vunpack.c.l.s4 1987475062
  %v1798 = vunpack.c.0.s8 %v1797
  %v1799 = vlaneseq
  %v1800 = vshrl.u32 %v1799, 7
  %v1801 = vsub.s32 %v1798, %v1800
  %v1802 = vrot.slane %v1599, %v1801
  %v1804 = vunpack.c.l.s4 269488144
  %v1805 = vunpack.c.0.s8 %v1804
  %v1806 = vlaneseq
  %v1807 = vshrl.u32 %v1806, 7
  %v1808 = vsub.s32 %v1805, %v1807
  %v1809 = vrot.slane %v1603, %v1808
  %v1811 = vunpack.c.l.s4 842150450
  %v1812 = vunpack.c.0.s8 %v1811
  %v1813 = vlaneseq
  %v1814 = vshrl.u32 %v1813, 7
  %v1815 = vsub.s32 %v1812, %v1814
  %v1816 = vrot.slane %v1603, %v1815
  %v1818 = vunpack.c.l.s4 1414812756
  %v1819 = vunpack.c.0.s8 %v1818
  %v1820 = vlaneseq
  %v1821 = vshrl.u32 %v1820, 7
  %v1822 = vsub.s32 %v1819, %v1821
  %v1823 = vrot.slane %v1603, %v1822
  %v1825 = vunpack.c.l.s4 1987475062
  %v1826 = vunpack.c.0.s8 %v1825
  %v1827 = vlaneseq
  %v1828 = vshrl.u32 %v1827, 7
  %v1829 = vsub.s32 %v1826, %v1828
  %v1830 = vrot.slane %v1603, %v1829
  %v1832 = vunpack.c.l.s4 269488144
  %v1833 = vunpack.c.0.s8 %v1832
  %v1834 = vlaneseq
  %v1835 = vshrl.u32 %v1834, 7
  %v1836 = vsub.s32 %v1833, %v1835
  %v1837 = vrot.slane %v1607, %v1836
  %v1839 = vunpack.c.l.s4 842150450
  %v1840 = vunpack.c.0.s8 %v1839
  %v1841 = vlaneseq
  %v1842 = vshrl.u32 %v1841, 7
  %v1843 = vsub.s32 %v1840, %v1842
  %v1844 = vrot.slane %v1607, %v1843
  %v1846 = vunpack.c.l.s4 1414812756
  %v1847 = vunpack.c.0.s8 %v1846
  %v1848 = vlaneseq
  %v1849 = vshrl.u32 %v1848, 7
  %v1850 = vsub.s32 %v1847, %v1849
  %v1851 = vrot.slane %v1607, %v1850
  %v1853 = vunpack.c.l.s4 1987475062
  %v1854 = vunpack.c.0.s8 %v1853
  %v1855 = vlaneseq
  %v1856 = vshrl.u32 %v1855, 7
  %v1857 = vsub.s32 %v1854, %v1856
  %v1858 = vrot.slane %v1607, %v1857
  %v1860 = vunpack.c.l.s4 269488144
  %v1861 = vunpack.c.0.s8 %v1860
  %v1862 = vlaneseq
  %v1863 = vshrl.u32 %v1862, 7
  %v1864 = vsub.s32 %v1861, %v1863
  %v1865 = vrot.slane %v1611, %v1864
  %v1867 = vunpack.c.l.s4 842150450
  %v1868 = vunpack.c.0.s8 %v1867
  %v1869 = vlaneseq
  %v1870 = vshrl.u32 %v1869, 7
  %v1871 = vsub.s32 %v1868, %v1870
  %v1872 = vrot.slane %v1611, %v1871
  %v1874 = vunpack.c.l.s4 1414812756
  %v1875 = vunpack.c.0.s8 %v1874
  %v1876 = vlaneseq
  %v1877 = vshrl.u32 %v1876, 7
  %v1878 = vsub.s32 %v1875, %v1877
  %v1879 = vrot.slane %v1611, %v1878
  %v1881 = vunpack.c.l.s4 1987475062
  %v1882 = vunpack.c.0.s8 %v1881
  %v1883 = vlaneseq
  %v1884 = vshrl.u32 %v1883, 7
  %v1885 = vsub.s32 %v1882, %v1884
  %v1886 = vrot.slane %v1611, %v1885
  %v1888 = vunpack.c.l.s4 269488144
  %v1889 = vunpack.c.0.s8 %v1888
  %v1890 = vlaneseq
  %v1891 = vshrl.u32 %v1890, 7
  %v1892 = vsub.s32 %v1889, %v1891
  %v1893 = vrot.slane %v1618, %v1892
  %v1895 = vunpack.c.l.s4 842150450
  %v1896 = vunpack.c.0.s8 %v1895
  %v1897 = vlaneseq
  %v1898 = vshrl.u32 %v1897, 7
  %v1899 = vsub.s32 %v1896, %v1898
  %v1900 = vrot.slane %v1618, %v1899
  %v1902 = vunpack.c.l.s4 1414812756
  %v1903 = vunpack.c.0.s8 %v1902
  %v1904 = vlaneseq
  %v1905 = vshrl.u32 %v1904, 7
  %v1906 = vsub.s32 %v1903, %v1905
  %v1907 = vrot.slane %v1618, %v1906
  %v1909 = vunpack.c.l.s4 1987475062
  %v1910 = vunpack.c.0.s8 %v1909
  %v1911 = vlaneseq
  %v1912 = vshrl.u32 %v1911, 7
  %v1913 = vsub.s32 %v1910, %v1912
  %v1914 = vrot.slane %v1618, %v1913
  %v1916 = vunpack.c.l.s4 269488144
  %v1917 = vunpack.c.0.s8 %v1916
  %v1918 = vlaneseq
  %v1919 = vshrl.u32 %v1918, 7
  %v1920 = vsub.s32 %v1917, %v1919
  %v1921 = vrot.slane %v1622, %v1920
  %v1923 = vunpack.c.l.s4 842150450
  %v1924 = vunpack.c.0.s8 %v1923
  %v1925 = vlaneseq
  %v1926 = vshrl.u32 %v1925, 7
  %v1927 = vsub.s32 %v1924, %v1926
  %v1928 = vrot.slane %v1622, %v1927
  %v1930 = vunpack.c.l.s4 1414812756
  %v1931 = vunpack.c.0.s8 %v1930
  %v1932 = vlaneseq
  %v1933 = vshrl.u32 %v1932, 7
  %v1934 = vsub.s32 %v1931, %v1933
  %v1935 = vrot.slane %v1622, %v1934
  %v1937 = vunpack.c.l.s4 1987475062
  %v1938 = vunpack.c.0.s8 %v1937
  %v1939 = vlaneseq
  %v1940 = vshrl.u32 %v1939, 7
  %v1941 = vsub.s32 %v1938, %v1940
  %v1942 = vrot.slane %v1622, %v1941
  %v1944 = vunpack.c.l.s4 269488144
  %v1945 = vunpack.c.0.s8 %v1944
  %v1946 = vlaneseq
  %v1947 = vshrl.u32 %v1946, 7
  %v1948 = vsub.s32 %v1945, %v1947
  %v1949 = vrot.slane %v1626, %v1948
  %v1951 = vunpack.c.l.s4 842150450
  %v1952 = vunpack.c.0.s8 %v1951
  %v1953 = vlaneseq
  %v1954 = vshrl.u32 %v1953, 7
  %v1955 = vsub.s32 %v1952, %v1954
  %v1956 = vrot.slane %v1626, %v1955
  %v1958 = vunpack.c.l.s4 1414812756
  %v1959 = vunpack.c.0.s8 %v1958
  %v1960 = vlaneseq
  %v1961 = vshrl.u32 %v1960, 7
  %v1962 = vsub.s32 %v1959, %v1961
  %v1963 = vrot.slane %v1626, %v1962
  %v1965 = vunpack.c.l.s4 1987475062
  %v1966 = vunpack.c.0.s8 %v1965
  %v1967 = vlaneseq
  %v1968 = vshrl.u32 %v1967, 7
  %v1969 = vsub.s32 %v1966, %v1968
  %v1970 = vrot.slane %v1626, %v1969
  %v1972 = vunpack.c.l.s4 269488144
  %v1973 = vunpack.c.0.s8 %v1972
  %v1974 = vlaneseq
  %v1975 = vshrl.u32 %v1974, 7
  %v1976 = vsub.s32 %v1973, %v1975
  %v1977 = vrot.slane %v1630, %v1976
  %v1979 = vunpack.c.l.s4 842150450
  %v1980 = vunpack.c.0.s8 %v1979
  %v1981 = vlaneseq
  %v1982 = vshrl.u32 %v1981, 7
  %v1983 = vsub.s32 %v1980, %v1982
  %v1984 = vrot.slane %v1630, %v1983
  %v1986 = vunpack.c.l.s4 1414812756
  %v1987 = vunpack.c.0.s8 %v1986
  %v1988 = vlaneseq
  %v1989 = vshrl.u32 %v1988, 7
  %v1990 = vsub.s32 %v1987, %v1989
  %v1991 = vrot.slane %v1630, %v1990
  %v1993 = vunpack.c.l.s4 1987475062
  %v1994 = vunpack.c.0.s8 %v1993
  %v1995 = vlaneseq
  %v1996 = vshrl.u32 %v1995, 7
  %v1997 = vsub.s32 %v1994, %v1996
  %v1998 = vrot.slane %v1630, %v1997
  %v2000 = vunpack.c.l.s4 269488144
  %v2001 = vunpack.c.0.s8 %v2000
  %v2002 = vlaneseq
  %v2003 = vshrl.u32 %v2002, 7
  %v2004 = vsub.s32 %v2001, %v2003
  %v2005 = vrot.slane %v1634, %v2004
  %v2007 = vunpack.c.l.s4 842150450
  %v2008 = vunpack.c.0.s8 %v2007
  %v2009 = vlaneseq
  %v2010 = vshrl.u32 %v2009, 7
  %v2011 = vsub.s32 %v2008, %v2010
  %v2012 = vrot.slane %v1634, %v2011
  %v2014 = vunpack.c.l.s4 1414812756
  %v2015 = vunpack.c.0.s8 %v2014
  %v2016 = vlaneseq
  %v2017 = vshrl.u32 %v2016, 7
  %v2018 = vsub.s32 %v2015, %v2017
  %v2019 = vrot.slane %v1634, %v2018
  %v2021 = vunpack.c.l.s4 1987475062
  %v2022 = vunpack.c.0.s8 %v2021
  %v2023 = vlaneseq
  %v2024 = vshrl.u32 %v2023, 7
  %v2025 = vsub.s32 %v2022, %v2024
  %v2026 = vrot.slane %v1634, %v2025
  %v2028 = vunpack.c.l.s4 269488144
  %v2029 = vunpack.c.0.s8 %v2028
  %v2030 = vlaneseq
  %v2031 = vshrl.u32 %v2030, 7
  %v2032 = vsub.s32 %v2029, %v2031
  %v2033 = vrot.slane %v1638, %v2032
  %v2035 = vunpack.c.l.s4 842150450
  %v2036 = vunpack.c.0.s8 %v2035
  %v2037 = vlaneseq
  %v2038 = vshrl.u32 %v2037, 7
  %v2039 = vsub.s32 %v2036, %v2038
  %v2040 = vrot.slane %v1638, %v2039
  %v2042 = vunpack.c.l.s4 1414812756
  %v2043 = vunpack.c.0.s8 %v2042
  %v2044 = vlaneseq
  %v2045 = vshrl.u32 %v2044, 7
  %v2046 = vsub.s32 %v2043, %v2045
  %v2047 = vrot.slane %v1638, %v2046
  %v2049 = vunpack.c.l.s4 1987475062
  %v2050 = vunpack.c.0.s8 %v2049
  %v2051 = vlaneseq
  %v2052 = vshrl.u32 %v2051, 7
  %v2053 = vsub.s32 %v2050, %v2052
  %v2054 = vrot.slane %v1638, %v2053
  %v2056 = vunpack.c.l.s4 269488144
  %v2057 = vunpack.c.0.s8 %v2056
  %v2058 = vlaneseq
  %v2059 = vshrl.u32 %v2058, 7
  %v2060 = vsub.s32 %v2057, %v2059
  %v2061 = vrot.slane %v1642, %v2060
  %v2063 = vunpack.c.l.s4 842150450
  %v2064 = vunpack.c.0.s8 %v2063
  %v2065 = vlaneseq
  %v2066 = vshrl.u32 %v2065, 7
  %v2067 = vsub.s32 %v2064, %v2066
  %v2068 = vrot.slane %v1642, %v2067
  %v2070 = vunpack.c.l.s4 1414812756
  %v2071 = vunpack.c.0.s8 %v2070
  %v2072 = vlaneseq
  %v2073 = vshrl.u32 %v2072, 7
  %v2074 = vsub.s32 %v2071, %v2073
  %v2075 = vrot.slane %v1642, %v2074
  %v2077 = vunpack.c.l.s4 1987475062
  %v2078 = vunpack.c.0.s8 %v2077
  %v2079 = vlaneseq
  %v2080 = vshrl.u32 %v2079, 7
  %v2081 = vsub.s32 %v2078, %v2080
  %v2082 = vrot.slane %v1642, %v2081
  %v2084 = vunpack.c.l.s4 269488144
  %v2085 = vunpack.c.0.s8 %v2084
  %v2086 = vlaneseq
  %v2087 = vshrl.u32 %v2086, 7
  %v2088 = vsub.s32 %v2085, %v2087
  %v2089 = vrot.slane %v1646, %v2088
  %v2091 = vunpack.c.l.s4 842150450
  %v2092 = vunpack.c.0.s8 %v2091
  %v2093 = vlaneseq
  %v2094 = vshrl.u32 %v2093, 7
  %v2095 = vsub.s32 %v2092, %v2094
  %v2096 = vrot.slane %v1646, %v2095
  %v2098 = vunpack.c.l.s4 1414812756
  %v2099 = vunpack.c.0.s8 %v2098
  %v2100 = vlaneseq
  %v2101 = vshrl.u32 %v2100, 7
  %v2102 = vsub.s32 %v2099, %v2101
  %v2103 = vrot.slane %v1646, %v2102
  %v2105 = vunpack.c.l.s4 1987475062
  %v2106 = vunpack.c.0.s8 %v2105
  %v2107 = vlaneseq
  %v2108 = vshrl.u32 %v2107, 7
  %v2109 = vsub.s32 %v2106, %v2108
  %v2110 = vrot.slane %v1646, %v2109
  %v2175 = vmul.f32 %v1295, %v1669
  %v2176 = vmul.f32 %v1304, %v1676
  %v2177 = vmul.f32 %v1313, %v1683
  %v2178 = vmul.f32 %v1322, %v1690
  %v2179 = vmul.f32 %v1331, %v1697
  %v2180 = vmul.f32 %v1340, %v1704
  %v2181 = vmul.f32 %v1349, %v1711
  %v2182 = vmul.f32 %v1358, %v1718
  %v2183 = vmul.f32 %v1367, %v1725
  %v2184 = vmul.f32 %v1376, %v1732
  %v2185 = vmul.f32 %v1385, %v1739
  %v2186 = vmul.f32 %v1394, %v1746
  %v2187 = vmul.f32 %v1403, %v1753
  %v2188 = vmul.f32 %v1412, %v1760
  %v2189 = vmul.f32 %v1421, %v1767
  %v2190 = vmul.f32 %v1430, %v1774
  %v2191 = vmul.f32 %v1439, %v1781
  %v2192 = vmul.f32 %v1448, %v1788
  %v2193 = vmul.f32 %v1457, %v1795
  %v2194 = vmul.f32 %v1466, %v1802
  %v2195 = vmul.f32 %v1475, %v1809
  %v2196 = vmul.f32 %v1484, %v1816
  %v2197 = vmul.f32 %v1493, %v1823
  %v2198 = vmul.f32 %v1502, %v1830
  %v2199 = vmul.f32 %v1511, %v1837
  %v2200 = vmul.f32 %v1520, %v1844
  %v2201 = vmul.f32 %v1529, %v1851
  %v2202 = vmul.f32 %v1538, %v1858
  %v2203 = vmul.f32 %v1547, %v1865
  %v2204 = vmul.f32 %v1556, %v1872
  %v2205 = vmul.f32 %v1565, %v1879
  %v2206 = vmul.f32 %v1574, %v1886
  %v2207 = vmul.f32 %v1296, %v1893
  %v2208 = vmul.f32 %v1305, %v1900
  %v2209 = vmul.f32 %v1314, %v1907
  %v2210 = vmul.f32 %v1323, %v1914
  %v2211 = vmul.f32 %v1332, %v1921
  %v2212 = vmul.f32 %v1341, %v1928
  %v2213 = vmul.f32 %v1350, %v1935
  %v2214 = vmul.f32 %v1359, %v1942
  %v2215 = vmul.f32 %v1368, %v1949
  %v2216 = vmul.f32 %v1377, %v1956
  %v2217 = vmul.f32 %v1386, %v1963
  %v2218 = vmul.f32 %v1395, %v1970
  %v2219 = vmul.f32 %v1404, %v1977
  %v2220 = vmul.f32 %v1413, %v1984
  %v2221 = vmul.f32 %v1422, %v1991
  %v2222 = vmul.f32 %v1431, %v1998
  %v2223 = vmul.f32 %v1440, %v2005
  %v2224 = vmul.f32 %v1449, %v2012
  %v2225 = vmul.f32 %v1458, %v2019
  %v2226 = vmul.f32 %v1467, %v2026
  %v2227 = vmul.f32 %v1476, %v2033
  %v2228 = vmul.f32 %v1485, %v2040
  %v2229 = vmul.f32 %v1494, %v2047
  %v2230 = vmul.f32 %v1503, %v2054
  %v2231 = vmul.f32 %v1512, %v2061
  %v2232 = vmul.f32 %v1521, %v2068
  %v2233 = vmul.f32 %v1530, %v2075
  %v2234 = vmul.f32 %v1539, %v2082
  %v2235 = vmul.f32 %v1548, %v2089
  %v2236 = vmul.f32 %v1557, %v2096
  %v2237 = vmul.f32 %v1566, %v2103
  %v2238 = vmul.f32 %v1575, %v2110
  %v2239 = vcombine.low %v2175, %v2207
  %v2241 = vunpack.c.l.s4 1934713408
  %v2242 = vunpack.c.0.s8 %v2241
  %v2243 = vlaneseq
  %v2244 = vshrl.u32 %v2243, 7
  %v2245 = vsub.s32 %v2242, %v2244
  %v2246 = vrot.slane %v2239, %v2245
  %v2247 = vcombine.high %v2246, 0.0
  %v2248 = vcombine.low %v2176, %v2208
  %v2250 = vunpack.c.l.s4 1934713408
  %v2251 = vunpack.c.0.s8 %v2250
  %v2252 = vlaneseq
  %v2253 = vshrl.u32 %v2252, 7
  %v2254 = vsub.s32 %v2251, %v2253
  %v2255 = vrot.slane %v2248, %v2254
  %v2256 = vcombine.high %v2255, 0.0
  %v2257 = vcombine.low %v2177, %v2209
  %v2259 = vunpack.c.l.s4 1934713408
  %v2260 = vunpack.c.0.s8 %v2259
  %v2261 = vlaneseq
  %v2262 = vshrl.u32 %v2261, 7
  %v2263 = vsub.s32 %v2260, %v2262
  %v2264 = vrot.slane %v2257, %v2263
  %v2265 = vcombine.high %v2264, 0.0
  %v2266 = vcombine.low %v2178, %v2210
  %v2268 = vunpack.c.l.s4 1934713408
  %v2269 = vunpack.c.0.s8 %v2268
  %v2270 = vlaneseq
  %v2271 = vshrl.u32 %v2270, 7
  %v2272 = vsub.s32 %v2269, %v2271
  %v2273 = vrot.slane %v2266, %v2272
  %v2274 = vcombine.high %v2273, 0.0
  %v2275 = vcombine.low %v2179, %v2211
  %v2277 = vunpack.c.l.s4 1934713408
  %v2278 = vunpack.c.0.s8 %v2277
  %v2279 = vlaneseq
  %v2280 = vshrl.u32 %v2279, 7
  %v2281 = vsub.s32 %v2278, %v2280
  %v2282 = vrot.slane %v2275, %v2281
  %v2283 = vcombine.high %v2282, 0.0
  %v2284 = vcombine.low %v2180, %v2212
  %v2286 = vunpack.c.l.s4 1934713408
  %v2287 = vunpack.c.0.s8 %v2286
  %v2288 = vlaneseq
  %v2289 = vshrl.u32 %v2288, 7
  %v2290 = vsub.s32 %v2287, %v2289
  %v2291 = vrot.slane %v2284, %v2290
  %v2292 = vcombine.high %v2291, 0.0
  %v2293 = vcombine.low %v2181, %v2213
  %v2295 = vunpack.c.l.s4 1934713408
  %v2296 = vunpack.c.0.s8 %v2295
  %v2297 = vlaneseq
  %v2298 = vshrl.u32 %v2297, 7
  %v2299 = vsub.s32 %v2296, %v2298
  %v2300 = vrot.slane %v2293, %v2299
  %v2301 = vcombine.high %v2300, 0.0
  %v2302 = vcombine.low %v2182, %v2214
  %v2304 = vunpack.c.l.s4 1934713408
  %v2305 = vunpack.c.0.s8 %v2304
  %v2306 = vlaneseq
  %v2307 = vshrl.u32 %v2306, 7
  %v2308 = vsub.s32 %v2305, %v2307
  %v2309 = vrot.slane %v2302, %v2308
  %v2310 = vcombine.high %v2309, 0.0
  %v2311 = vcombine.low %v2183, %v2215
  %v2313 = vunpack.c.l.s4 1934713408
  %v2314 = vunpack.c.0.s8 %v2313
  %v2315 = vlaneseq
  %v2316 = vshrl.u32 %v2315, 7
  %v2317 = vsub.s32 %v2314, %v2316
  %v2318 = vrot.slane %v2311, %v2317
  %v2319 = vcombine.high %v2318, 0.0
  %v2320 = vcombine.low %v2184, %v2216
  %v2322 = vunpack.c.l.s4 1934713408
  %v2323 = vunpack.c.0.s8 %v2322
  %v2324 = vlaneseq
  %v2325 = vshrl.u32 %v2324, 7
  %v2326 = vsub.s32 %v2323, %v2325
  %v2327 = vrot.slane %v2320, %v2326
  %v2328 = vcombine.high %v2327, 0.0
  %v2329 = vcombine.low %v2185, %v2217
  %v2331 = vunpack.c.l.s4 1934713408
  %v2332 = vunpack.c.0.s8 %v2331
  %v2333 = vlaneseq
  %v2334 = vshrl.u32 %v2333, 7
  %v2335 = vsub.s32 %v2332, %v2334
  %v2336 = vrot.slane %v2329, %v2335
  %v2337 = vcombine.high %v2336, 0.0
  %v2338 = vcombine.low %v2186, %v2218
  %v2340 = vunpack.c.l.s4 1934713408
  %v2341 = vunpack.c.0.s8 %v2340
  %v2342 = vlaneseq
  %v2343 = vshrl.u32 %v2342, 7
  %v2344 = vsub.s32 %v2341, %v2343
  %v2345 = vrot.slane %v2338, %v2344
  %v2346 = vcombine.high %v2345, 0.0
  %v2347 = vcombine.low %v2187, %v2219
  %v2349 = vunpack.c.l.s4 1934713408
  %v2350 = vunpack.c.0.s8 %v2349
  %v2351 = vlaneseq
  %v2352 = vshrl.u32 %v2351, 7
  %v2353 = vsub.s32 %v2350, %v2352
  %v2354 = vrot.slane %v2347, %v2353
  %v2355 = vcombine.high %v2354, 0.0
  %v2356 = vcombine.low %v2188, %v2220
  %v2358 = vunpack.c.l.s4 1934713408
  %v2359 = vunpack.c.0.s8 %v2358
  %v2360 = vlaneseq
  %v2361 = vshrl.u32 %v2360, 7
  %v2362 = vsub.s32 %v2359, %v2361
  %v2363 = vrot.slane %v2356, %v2362
  %v2364 = vcombine.high %v2363, 0.0
  %v2365 = vcombine.low %v2189, %v2221
  %v2367 = vunpack.c.l.s4 1934713408
  %v2368 = vunpack.c.0.s8 %v2367
  %v2369 = vlaneseq
  %v2370 = vshrl.u32 %v2369, 7
  %v2371 = vsub.s32 %v2368, %v2370
  %v2372 = vrot.slane %v2365, %v2371
  %v2373 = vcombine.high %v2372, 0.0
  %v2374 = vcombine.low %v2190, %v2222
  %v2376 = vunpack.c.l.s4 1934713408
  %v2377 = vunpack.c.0.s8 %v2376
  %v2378 = vlaneseq
  %v2379 = vshrl.u32 %v2378, 7
  %v2380 = vsub.s32 %v2377, %v2379
  %v2381 = vrot.slane %v2374, %v2380
  %v2382 = vcombine.high %v2381, 0.0
  %v2383 = vcombine.low %v2191, %v2223
  %v2385 = vunpack.c.l.s4 1934713408
  %v2386 = vunpack.c.0.s8 %v2385
  %v2387 = vlaneseq
  %v2388 = vshrl.u32 %v2387, 7
  %v2389 = vsub.s32 %v2386, %v2388
  %v2390 = vrot.slane %v2383, %v2389
  %v2391 = vcombine.high %v2390, 0.0
  %v2392 = vcombine.low %v2192, %v2224
  %v2394 = vunpack.c.l.s4 1934713408
  %v2395 = vunpack.c.0.s8 %v2394
  %v2396 = vlaneseq
  %v2397 = vshrl.u32 %v2396, 7
  %v2398 = vsub.s32 %v2395, %v2397
  %v2399 = vrot.slane %v2392, %v2398
  %v2400 = vcombine.high %v2399, 0.0
  %v2401 = vcombine.low %v2193, %v2225
  %v2403 = vunpack.c.l.s4 1934713408
  %v2404 = vunpack.c.0.s8 %v2403
  %v2405 = vlaneseq
  %v2406 = vshrl.u32 %v2405, 7
  %v2407 = vsub.s32 %v2404, %v2406
  %v2408 = vrot.slane %v2401, %v2407
  %v2409 = vcombine.high %v2408, 0.0
  %v2410 = vcombine.low %v2194, %v2226
  %v2412 = vunpack.c.l.s4 1934713408
  %v2413 = vunpack.c.0.s8 %v2412
  %v2414 = vlaneseq
  %v2415 = vshrl.u32 %v2414, 7
  %v2416 = vsub.s32 %v2413, %v2415
  %v2417 = vrot.slane %v2410, %v2416
  %v2418 = vcombine.high %v2417, 0.0
  %v2419 = vcombine.low %v2195, %v2227
  %v2421 = vunpack.c.l.s4 1934713408
  %v2422 = vunpack.c.0.s8 %v2421
  %v2423 = vlaneseq
  %v2424 = vshrl.u32 %v2423, 7
  %v2425 = vsub.s32 %v2422, %v2424
  %v2426 = vrot.slane %v2419, %v2425
  %v2427 = vcombine.high %v2426, 0.0
  %v2428 = vcombine.low %v2196, %v2228
  %v2430 = vunpack.c.l.s4 1934713408
  %v2431 = vunpack.c.0.s8 %v2430
  %v2432 = vlaneseq
  %v2433 = vshrl.u32 %v2432, 7
  %v2434 = vsub.s32 %v2431, %v2433
  %v2435 = vrot.slane %v2428, %v2434
  %v2436 = vcombine.high %v2435, 0.0
  %v2437 = vcombine.low %v2197, %v2229
  %v2439 = vunpack.c.l.s4 1934713408
  %v2440 = vunpack.c.0.s8 %v2439
  %v2441 = vlaneseq
  %v2442 = vshrl.u32 %v2441, 7
  %v2443 = vsub.s32 %v2440, %v2442
  %v2444 = vrot.slane %v2437, %v2443
  %v2445 = vcombine.high %v2444, 0.0
  %v2446 = vcombine.low %v2198, %v2230
  %v2448 = vunpack.c.l.s4 1934713408
  %v2449 = vunpack.c.0.s8 %v2448
  %v2450 = vlaneseq
  %v2451 = vshrl.u32 %v2450, 7
  %v2452 = vsub.s32 %v2449, %v2451
  %v2453 = vrot.slane %v2446, %v2452
  %v2454 = vcombine.high %v2453, 0.0
  %v2455 = vcombine.low %v2199, %v2231
  %v2457 = vunpack.c.l.s4 1934713408
  %v2458 = vunpack.c.0.s8 %v2457
  %v2459 = vlaneseq
  %v2460 = vshrl.u32 %v2459, 7
  %v2461 = vsub.s32 %v2458, %v2460
  %v2462 = vrot.slane %v2455, %v2461
  %v2463 = vcombine.high %v2462, 0.0
  %v2464 = vcombine.low %v2200, %v2232
  %v2466 = vunpack.c.l.s4 1934713408
  %v2467 = vunpack.c.0.s8 %v2466
  %v2468 = vlaneseq
  %v2469 = vshrl.u32 %v2468, 7
  %v2470 = vsub.s32 %v2467, %v2469
  %v2471 = vrot.slane %v2464, %v2470
  %v2472 = vcombine.high %v2471, 0.0
  %v2473 = vcombine.low %v2201, %v2233
  %v2475 = vunpack.c.l.s4 1934713408
  %v2476 = vunpack.c.0.s8 %v2475
  %v2477 = vlaneseq
  %v2478 = vshrl.u32 %v2477, 7
  %v2479 = vsub.s32 %v2476, %v2478
  %v2480 = vrot.slane %v2473, %v2479
  %v2481 = vcombine.high %v2480, 0.0
  %v2482 = vcombine.low %v2202, %v2234
  %v2484 = vunpack.c.l.s4 1934713408
  %v2485 = vunpack.c.0.s8 %v2484
  %v2486 = vlaneseq
  %v2487 = vshrl.u32 %v2486, 7
  %v2488 = vsub.s32 %v2485, %v2487
  %v2489 = vrot.slane %v2482, %v2488
  %v2490 = vcombine.high %v2489, 0.0
  %v2491 = vcombine.low %v2203, %v2235
  %v2493 = vunpack.c.l.s4 1934713408
  %v2494 = vunpack.c.0.s8 %v2493
  %v2495 = vlaneseq
  %v2496 = vshrl.u32 %v2495, 7
  %v2497 = vsub.s32 %v2494, %v2496
  %v2498 = vrot.slane %v2491, %v2497
  %v2499 = vcombine.high %v2498, 0.0
  %v2500 = vcombine.low %v2204, %v2236
  %v2502 = vunpack.c.l.s4 1934713408
  %v2503 = vunpack.c.0.s8 %v2502
  %v2504 = vlaneseq
  %v2505 = vshrl.u32 %v2504, 7
  %v2506 = vsub.s32 %v2503, %v2505
  %v2507 = vrot.slane %v2500, %v2506
  %v2508 = vcombine.high %v2507, 0.0
  %v2509 = vcombine.low %v2205, %v2237
  %v2511 = vunpack.c.l.s4 1934713408
  %v2512 = vunpack.c.0.s8 %v2511
  %v2513 = vlaneseq
  %v2514 = vshrl.u32 %v2513, 7
  %v2515 = vsub.s32 %v2512, %v2514
  %v2516 = vrot.slane %v2509, %v2515
  %v2517 = vcombine.high %v2516, 0.0
  %v2518 = vcombine.low %v2206, %v2238
  %v2520 = vunpack.c.l.s4 1934713408
  %v2521 = vunpack.c.0.s8 %v2520
  %v2522 = vlaneseq
  %v2523 = vshrl.u32 %v2522, 7
  %v2524 = vsub.s32 %v2521, %v2523
  %v2525 = vrot.slane %v2518, %v2524
  %v2526 = vcombine.high %v2525, 0.0
  %v2529 = vunpack.c.l.s4 1983009808
  %v2530 = vunpack.c.0.s8 %v2529
  %v2531 = vlaneseq
  %v2532 = vshrl.u32 %v2531, 7
  %v2533 = vsub.s32 %v2530, %v2532
  %v2534 = vrot.slane %v2247, %v2533
  %2535 = vrot.lane.b32.xlu0 %v2534, 16
  %v2536 = vpop.permute.xlu0 %2535
  %v2540 = vunpack.c.l.s4 1983009808
  %v2541 = vunpack.c.0.s8 %v2540
  %v2542 = vlaneseq
  %v2543 = vshrl.u32 %v2542, 7
  %v2544 = vsub.s32 %v2541, %v2543
  %v2545 = vrot.slane %v2255, %v2544
  %2546 = vrot.lane.b32.xlu0 %v2545, 32
  %v2547 = vpop.permute.xlu0 %2546
  %v2551 = vunpack.c.l.s4 1983009808
  %v2552 = vunpack.c.0.s8 %v2551
  %v2553 = vlaneseq
  %v2554 = vshrl.u32 %v2553, 7
  %v2555 = vsub.s32 %v2552, %v2554
  %v2556 = vrot.slane %v2256, %v2555
  %2557 = vrot.lane.b32.xlu0 %v2556, 48
  %v2558 = vpop.permute.xlu0 %2557
  %v2562 = vunpack.c.l.s4 1983009808
  %v2563 = vunpack.c.0.s8 %v2562
  %v2564 = vlaneseq
  %v2565 = vshrl.u32 %v2564, 7
  %v2566 = vsub.s32 %v2563, %v2565
  %v2567 = vrot.slane %v2264, %v2566
  %2568 = vrot.lane.b32.xlu0 %v2567, 64
  %v2569 = vpop.permute.xlu0 %2568
  %v2573 = vunpack.c.l.s4 1983009808
  %v2574 = vunpack.c.0.s8 %v2573
  %v2575 = vlaneseq
  %v2576 = vshrl.u32 %v2575, 7
  %v2577 = vsub.s32 %v2574, %v2576
  %v2578 = vrot.slane %v2265, %v2577
  %2579 = vrot.lane.b32.xlu0 %v2578, 80
  %v2580 = vpop.permute.xlu0 %2579
  %v2584 = vunpack.c.l.s4 1983009808
  %v2585 = vunpack.c.0.s8 %v2584
  %v2586 = vlaneseq
  %v2587 = vshrl.u32 %v2586, 7
  %v2588 = vsub.s32 %v2585, %v2587
  %v2589 = vrot.slane %v2273, %v2588
  %2590 = vrot.lane.b32.xlu0 %v2589, 96
  %v2591 = vpop.permute.xlu0 %2590
  %v2595 = vunpack.c.l.s4 1983009808
  %v2596 = vunpack.c.0.s8 %v2595
  %v2597 = vlaneseq
  %v2598 = vshrl.u32 %v2597, 7
  %v2599 = vsub.s32 %v2596, %v2598
  %v2600 = vrot.slane %v2274, %v2599
  %2601 = vrot.lane.b32.xlu0 %v2600, 112
  %v2602 = vpop.permute.xlu0 %2601
  %v2606 = vunpack.c.l.s4 1983009808
  %v2607 = vunpack.c.0.s8 %v2606
  %v2608 = vlaneseq
  %v2609 = vshrl.u32 %v2608, 7
  %v2610 = vsub.s32 %v2607, %v2609
  %v2611 = vrot.slane %v2283, %v2610
  %2612 = vrot.lane.b32.xlu0 %v2611, 16
  %v2613 = vpop.permute.xlu0 %2612
  %v2617 = vunpack.c.l.s4 1983009808
  %v2618 = vunpack.c.0.s8 %v2617
  %v2619 = vlaneseq
  %v2620 = vshrl.u32 %v2619, 7
  %v2621 = vsub.s32 %v2618, %v2620
  %v2622 = vrot.slane %v2291, %v2621
  %2623 = vrot.lane.b32.xlu0 %v2622, 32
  %v2624 = vpop.permute.xlu0 %2623
  %v2628 = vunpack.c.l.s4 1983009808
  %v2629 = vunpack.c.0.s8 %v2628
  %v2630 = vlaneseq
  %v2631 = vshrl.u32 %v2630, 7
  %v2632 = vsub.s32 %v2629, %v2631
  %v2633 = vrot.slane %v2292, %v2632
  %2634 = vrot.lane.b32.xlu0 %v2633, 48
  %v2635 = vpop.permute.xlu0 %2634
  %v2639 = vunpack.c.l.s4 1983009808
  %v2640 = vunpack.c.0.s8 %v2639
  %v2641 = vlaneseq
  %v2642 = vshrl.u32 %v2641, 7
  %v2643 = vsub.s32 %v2640, %v2642
  %v2644 = vrot.slane %v2300, %v2643
  %2645 = vrot.lane.b32.xlu0 %v2644, 64
  %v2646 = vpop.permute.xlu0 %2645
  %v2650 = vunpack.c.l.s4 1983009808
  %v2651 = vunpack.c.0.s8 %v2650
  %v2652 = vlaneseq
  %v2653 = vshrl.u32 %v2652, 7
  %v2654 = vsub.s32 %v2651, %v2653
  %v2655 = vrot.slane %v2301, %v2654
  %2656 = vrot.lane.b32.xlu0 %v2655, 80
  %v2657 = vpop.permute.xlu0 %2656
  %v2661 = vunpack.c.l.s4 1983009808
  %v2662 = vunpack.c.0.s8 %v2661
  %v2663 = vlaneseq
  %v2664 = vshrl.u32 %v2663, 7
  %v2665 = vsub.s32 %v2662, %v2664
  %v2666 = vrot.slane %v2309, %v2665
  %2667 = vrot.lane.b32.xlu0 %v2666, 96
  %v2668 = vpop.permute.xlu0 %2667
  %v2672 = vunpack.c.l.s4 1983009808
  %v2673 = vunpack.c.0.s8 %v2672
  %v2674 = vlaneseq
  %v2675 = vshrl.u32 %v2674, 7
  %v2676 = vsub.s32 %v2673, %v2675
  %v2677 = vrot.slane %v2310, %v2676
  %2678 = vrot.lane.b32.xlu0 %v2677, 112
  %v2679 = vpop.permute.xlu0 %2678
  %v2683 = vunpack.c.l.s4 1983009808
  %v2684 = vunpack.c.0.s8 %v2683
  %v2685 = vlaneseq
  %v2686 = vshrl.u32 %v2685, 7
  %v2687 = vsub.s32 %v2684, %v2686
  %v2688 = vrot.slane %v2319, %v2687
  %2689 = vrot.lane.b32.xlu0 %v2688, 16
  %v2690 = vpop.permute.xlu0 %2689
  %v2694 = vunpack.c.l.s4 1983009808
  %v2695 = vunpack.c.0.s8 %v2694
  %v2696 = vlaneseq
  %v2697 = vshrl.u32 %v2696, 7
  %v2698 = vsub.s32 %v2695, %v2697
  %v2699 = vrot.slane %v2327, %v2698
  %2700 = vrot.lane.b32.xlu0 %v2699, 32
  %v2701 = vpop.permute.xlu0 %2700
  %v2705 = vunpack.c.l.s4 1983009808
  %v2706 = vunpack.c.0.s8 %v2705
  %v2707 = vlaneseq
  %v2708 = vshrl.u32 %v2707, 7
  %v2709 = vsub.s32 %v2706, %v2708
  %v2710 = vrot.slane %v2328, %v2709
  %2711 = vrot.lane.b32.xlu0 %v2710, 48
  %v2712 = vpop.permute.xlu0 %2711
  %v2716 = vunpack.c.l.s4 1983009808
  %v2717 = vunpack.c.0.s8 %v2716
  %v2718 = vlaneseq
  %v2719 = vshrl.u32 %v2718, 7
  %v2720 = vsub.s32 %v2717, %v2719
  %v2721 = vrot.slane %v2336, %v2720
  %2722 = vrot.lane.b32.xlu0 %v2721, 64
  %v2723 = vpop.permute.xlu0 %2722
  %v2727 = vunpack.c.l.s4 1983009808
  %v2728 = vunpack.c.0.s8 %v2727
  %v2729 = vlaneseq
  %v2730 = vshrl.u32 %v2729, 7
  %v2731 = vsub.s32 %v2728, %v2730
  %v2732 = vrot.slane %v2337, %v2731
  %2733 = vrot.lane.b32.xlu0 %v2732, 80
  %v2734 = vpop.permute.xlu0 %2733
  %v2738 = vunpack.c.l.s4 1983009808
  %v2739 = vunpack.c.0.s8 %v2738
  %v2740 = vlaneseq
  %v2741 = vshrl.u32 %v2740, 7
  %v2742 = vsub.s32 %v2739, %v2741
  %v2743 = vrot.slane %v2345, %v2742
  %2744 = vrot.lane.b32.xlu0 %v2743, 96
  %v2745 = vpop.permute.xlu0 %2744
  %v2749 = vunpack.c.l.s4 1983009808
  %v2750 = vunpack.c.0.s8 %v2749
  %v2751 = vlaneseq
  %v2752 = vshrl.u32 %v2751, 7
  %v2753 = vsub.s32 %v2750, %v2752
  %v2754 = vrot.slane %v2346, %v2753
  %2755 = vrot.lane.b32.xlu0 %v2754, 112
  %v2756 = vpop.permute.xlu0 %2755
  %v2760 = vunpack.c.l.s4 1983009808
  %v2761 = vunpack.c.0.s8 %v2760
  %v2762 = vlaneseq
  %v2763 = vshrl.u32 %v2762, 7
  %v2764 = vsub.s32 %v2761, %v2763
  %v2765 = vrot.slane %v2355, %v2764
  %2766 = vrot.lane.b32.xlu0 %v2765, 16
  %v2767 = vpop.permute.xlu0 %2766
  %v2771 = vunpack.c.l.s4 1983009808
  %v2772 = vunpack.c.0.s8 %v2771
  %v2773 = vlaneseq
  %v2774 = vshrl.u32 %v2773, 7
  %v2775 = vsub.s32 %v2772, %v2774
  %v2776 = vrot.slane %v2363, %v2775
  %2777 = vrot.lane.b32.xlu0 %v2776, 32
  %v2778 = vpop.permute.xlu0 %2777
  %v2782 = vunpack.c.l.s4 1983009808
  %v2783 = vunpack.c.0.s8 %v2782
  %v2784 = vlaneseq
  %v2785 = vshrl.u32 %v2784, 7
  %v2786 = vsub.s32 %v2783, %v2785
  %v2787 = vrot.slane %v2364, %v2786
  %2788 = vrot.lane.b32.xlu0 %v2787, 48
  %v2789 = vpop.permute.xlu0 %2788
  %v2793 = vunpack.c.l.s4 1983009808
  %v2794 = vunpack.c.0.s8 %v2793
  %v2795 = vlaneseq
  %v2796 = vshrl.u32 %v2795, 7
  %v2797 = vsub.s32 %v2794, %v2796
  %v2798 = vrot.slane %v2372, %v2797
  %2799 = vrot.lane.b32.xlu0 %v2798, 64
  %v2800 = vpop.permute.xlu0 %2799
  %v2804 = vunpack.c.l.s4 1983009808
  %v2805 = vunpack.c.0.s8 %v2804
  %v2806 = vlaneseq
  %v2807 = vshrl.u32 %v2806, 7
  %v2808 = vsub.s32 %v2805, %v2807
  %v2809 = vrot.slane %v2373, %v2808
  %2810 = vrot.lane.b32.xlu0 %v2809, 80
  %v2811 = vpop.permute.xlu0 %2810
  %v2815 = vunpack.c.l.s4 1983009808
  %v2816 = vunpack.c.0.s8 %v2815
  %v2817 = vlaneseq
  %v2818 = vshrl.u32 %v2817, 7
  %v2819 = vsub.s32 %v2816, %v2818
  %v2820 = vrot.slane %v2381, %v2819
  %2821 = vrot.lane.b32.xlu0 %v2820, 96
  %v2822 = vpop.permute.xlu0 %2821
  %v2826 = vunpack.c.l.s4 1983009808
  %v2827 = vunpack.c.0.s8 %v2826
  %v2828 = vlaneseq
  %v2829 = vshrl.u32 %v2828, 7
  %v2830 = vsub.s32 %v2827, %v2829
  %v2831 = vrot.slane %v2382, %v2830
  %2832 = vrot.lane.b32.xlu0 %v2831, 112
  %v2833 = vpop.permute.xlu0 %2832
  %v2837 = vunpack.c.l.s4 1983009808
  %v2838 = vunpack.c.0.s8 %v2837
  %v2839 = vlaneseq
  %v2840 = vshrl.u32 %v2839, 7
  %v2841 = vsub.s32 %v2838, %v2840
  %v2842 = vrot.slane %v2391, %v2841
  %2843 = vrot.lane.b32.xlu0 %v2842, 16
  %v2844 = vpop.permute.xlu0 %2843
  %v2848 = vunpack.c.l.s4 1983009808
  %v2849 = vunpack.c.0.s8 %v2848
  %v2850 = vlaneseq
  %v2851 = vshrl.u32 %v2850, 7
  %v2852 = vsub.s32 %v2849, %v2851
  %v2853 = vrot.slane %v2399, %v2852
  %2854 = vrot.lane.b32.xlu0 %v2853, 32
  %v2855 = vpop.permute.xlu0 %2854
  %v2859 = vunpack.c.l.s4 1983009808
  %v2860 = vunpack.c.0.s8 %v2859
  %v2861 = vlaneseq
  %v2862 = vshrl.u32 %v2861, 7
  %v2863 = vsub.s32 %v2860, %v2862
  %v2864 = vrot.slane %v2400, %v2863
  %2865 = vrot.lane.b32.xlu0 %v2864, 48
  %v2866 = vpop.permute.xlu0 %2865
  %v2870 = vunpack.c.l.s4 1983009808
  %v2871 = vunpack.c.0.s8 %v2870
  %v2872 = vlaneseq
  %v2873 = vshrl.u32 %v2872, 7
  %v2874 = vsub.s32 %v2871, %v2873
  %v2875 = vrot.slane %v2408, %v2874
  %2876 = vrot.lane.b32.xlu0 %v2875, 64
  %v2877 = vpop.permute.xlu0 %2876
  %v2881 = vunpack.c.l.s4 1983009808
  %v2882 = vunpack.c.0.s8 %v2881
  %v2883 = vlaneseq
  %v2884 = vshrl.u32 %v2883, 7
  %v2885 = vsub.s32 %v2882, %v2884
  %v2886 = vrot.slane %v2409, %v2885
  %2887 = vrot.lane.b32.xlu0 %v2886, 80
  %v2888 = vpop.permute.xlu0 %2887
  %v2892 = vunpack.c.l.s4 1983009808
  %v2893 = vunpack.c.0.s8 %v2892
  %v2894 = vlaneseq
  %v2895 = vshrl.u32 %v2894, 7
  %v2896 = vsub.s32 %v2893, %v2895
  %v2897 = vrot.slane %v2417, %v2896
  %2898 = vrot.lane.b32.xlu0 %v2897, 96
  %v2899 = vpop.permute.xlu0 %2898
  %v2903 = vunpack.c.l.s4 1983009808
  %v2904 = vunpack.c.0.s8 %v2903
  %v2905 = vlaneseq
  %v2906 = vshrl.u32 %v2905, 7
  %v2907 = vsub.s32 %v2904, %v2906
  %v2908 = vrot.slane %v2418, %v2907
  %2909 = vrot.lane.b32.xlu0 %v2908, 112
  %v2910 = vpop.permute.xlu0 %2909
  %v2914 = vunpack.c.l.s4 1983009808
  %v2915 = vunpack.c.0.s8 %v2914
  %v2916 = vlaneseq
  %v2917 = vshrl.u32 %v2916, 7
  %v2918 = vsub.s32 %v2915, %v2917
  %v2919 = vrot.slane %v2427, %v2918
  %2920 = vrot.lane.b32.xlu0 %v2919, 16
  %v2921 = vpop.permute.xlu0 %2920
  %v2925 = vunpack.c.l.s4 1983009808
  %v2926 = vunpack.c.0.s8 %v2925
  %v2927 = vlaneseq
  %v2928 = vshrl.u32 %v2927, 7
  %v2929 = vsub.s32 %v2926, %v2928
  %v2930 = vrot.slane %v2435, %v2929
  %2931 = vrot.lane.b32.xlu0 %v2930, 32
  %v2932 = vpop.permute.xlu0 %2931
  %v2936 = vunpack.c.l.s4 1983009808
  %v2937 = vunpack.c.0.s8 %v2936
  %v2938 = vlaneseq
  %v2939 = vshrl.u32 %v2938, 7
  %v2940 = vsub.s32 %v2937, %v2939
  %v2941 = vrot.slane %v2436, %v2940
  %2942 = vrot.lane.b32.xlu0 %v2941, 48
  %v2943 = vpop.permute.xlu0 %2942
  %v2947 = vunpack.c.l.s4 1983009808
  %v2948 = vunpack.c.0.s8 %v2947
  %v2949 = vlaneseq
  %v2950 = vshrl.u32 %v2949, 7
  %v2951 = vsub.s32 %v2948, %v2950
  %v2952 = vrot.slane %v2444, %v2951
  %2953 = vrot.lane.b32.xlu0 %v2952, 64
  %v2954 = vpop.permute.xlu0 %2953
  %v2958 = vunpack.c.l.s4 1983009808
  %v2959 = vunpack.c.0.s8 %v2958
  %v2960 = vlaneseq
  %v2961 = vshrl.u32 %v2960, 7
  %v2962 = vsub.s32 %v2959, %v2961
  %v2963 = vrot.slane %v2445, %v2962
  %2964 = vrot.lane.b32.xlu0 %v2963, 80
  %v2965 = vpop.permute.xlu0 %2964
  %v2969 = vunpack.c.l.s4 1983009808
  %v2970 = vunpack.c.0.s8 %v2969
  %v2971 = vlaneseq
  %v2972 = vshrl.u32 %v2971, 7
  %v2973 = vsub.s32 %v2970, %v2972
  %v2974 = vrot.slane %v2453, %v2973
  %2975 = vrot.lane.b32.xlu0 %v2974, 96
  %v2976 = vpop.permute.xlu0 %2975
  %v2980 = vunpack.c.l.s4 1983009808
  %v2981 = vunpack.c.0.s8 %v2980
  %v2982 = vlaneseq
  %v2983 = vshrl.u32 %v2982, 7
  %v2984 = vsub.s32 %v2981, %v2983
  %v2985 = vrot.slane %v2454, %v2984
  %2986 = vrot.lane.b32.xlu0 %v2985, 112
  %v2987 = vpop.permute.xlu0 %2986
  %v2991 = vunpack.c.l.s4 1983009808
  %v2992 = vunpack.c.0.s8 %v2991
  %v2993 = vlaneseq
  %v2994 = vshrl.u32 %v2993, 7
  %v2995 = vsub.s32 %v2992, %v2994
  %v2996 = vrot.slane %v2463, %v2995
  %2997 = vrot.lane.b32.xlu0 %v2996, 16
  %v2998 = vpop.permute.xlu0 %2997
  %v3002 = vunpack.c.l.s4 1983009808
  %v3003 = vunpack.c.0.s8 %v3002
  %v3004 = vlaneseq
  %v3005 = vshrl.u32 %v3004, 7
  %v3006 = vsub.s32 %v3003, %v3005
  %v3007 = vrot.slane %v2471, %v3006
  %3008 = vrot.lane.b32.xlu0 %v3007, 32
  %v3009 = vpop.permute.xlu0 %3008
  %v3013 = vunpack.c.l.s4 1983009808
  %v3014 = vunpack.c.0.s8 %v3013
  %v3015 = vlaneseq
  %v3016 = vshrl.u32 %v3015, 7
  %v3017 = vsub.s32 %v3014, %v3016
  %v3018 = vrot.slane %v2472, %v3017
  %3019 = vrot.lane.b32.xlu0 %v3018, 48
  %v3020 = vpop.permute.xlu0 %3019
  %v3024 = vunpack.c.l.s4 1983009808
  %v3025 = vunpack.c.0.s8 %v3024
  %v3026 = vlaneseq
  %v3027 = vshrl.u32 %v3026, 7
  %v3028 = vsub.s32 %v3025, %v3027
  %v3029 = vrot.slane %v2480, %v3028
  %3030 = vrot.lane.b32.xlu0 %v3029, 64
  %v3031 = vpop.permute.xlu0 %3030
  %v3035 = vunpack.c.l.s4 1983009808
  %v3036 = vunpack.c.0.s8 %v3035
  %v3037 = vlaneseq
  %v3038 = vshrl.u32 %v3037, 7
  %v3039 = vsub.s32 %v3036, %v3038
  %v3040 = vrot.slane %v2481, %v3039
  %3041 = vrot.lane.b32.xlu0 %v3040, 80
  %v3042 = vpop.permute.xlu0 %3041
  %v3046 = vunpack.c.l.s4 1983009808
  %v3047 = vunpack.c.0.s8 %v3046
  %v3048 = vlaneseq
  %v3049 = vshrl.u32 %v3048, 7
  %v3050 = vsub.s32 %v3047, %v3049
  %v3051 = vrot.slane %v2489, %v3050
  %3052 = vrot.lane.b32.xlu0 %v3051, 96
  %v3053 = vpop.permute.xlu0 %3052
  %v3057 = vunpack.c.l.s4 1983009808
  %v3058 = vunpack.c.0.s8 %v3057
  %v3059 = vlaneseq
  %v3060 = vshrl.u32 %v3059, 7
  %v3061 = vsub.s32 %v3058, %v3060
  %v3062 = vrot.slane %v2490, %v3061
  %3063 = vrot.lane.b32.xlu0 %v3062, 112
  %v3064 = vpop.permute.xlu0 %3063
  %v3068 = vunpack.c.l.s4 1983009808
  %v3069 = vunpack.c.0.s8 %v3068
  %v3070 = vlaneseq
  %v3071 = vshrl.u32 %v3070, 7
  %v3072 = vsub.s32 %v3069, %v3071
  %v3073 = vrot.slane %v2499, %v3072
  %3074 = vrot.lane.b32.xlu0 %v3073, 16
  %v3075 = vpop.permute.xlu0 %3074
  %v3079 = vunpack.c.l.s4 1983009808
  %v3080 = vunpack.c.0.s8 %v3079
  %v3081 = vlaneseq
  %v3082 = vshrl.u32 %v3081, 7
  %v3083 = vsub.s32 %v3080, %v3082
  %v3084 = vrot.slane %v2507, %v3083
  %3085 = vrot.lane.b32.xlu0 %v3084, 32
  %v3086 = vpop.permute.xlu0 %3085
  %v3090 = vunpack.c.l.s4 1983009808
  %v3091 = vunpack.c.0.s8 %v3090
  %v3092 = vlaneseq
  %v3093 = vshrl.u32 %v3092, 7
  %v3094 = vsub.s32 %v3091, %v3093
  %v3095 = vrot.slane %v2508, %v3094
  %3096 = vrot.lane.b32.xlu0 %v3095, 48
  %v3097 = vpop.permute.xlu0 %3096
  %v3101 = vunpack.c.l.s4 1983009808
  %v3102 = vunpack.c.0.s8 %v3101
  %v3103 = vlaneseq
  %v3104 = vshrl.u32 %v3103, 7
  %v3105 = vsub.s32 %v3102, %v3104
  %v3106 = vrot.slane %v2516, %v3105
  %3107 = vrot.lane.b32.xlu0 %v3106, 64
  %v3108 = vpop.permute.xlu0 %3107
  %v3112 = vunpack.c.l.s4 1983009808
  %v3113 = vunpack.c.0.s8 %v3112
  %v3114 = vlaneseq
  %v3115 = vshrl.u32 %v3114, 7
  %v3116 = vsub.s32 %v3113, %v3115
  %v3117 = vrot.slane %v2517, %v3116
  %3118 = vrot.lane.b32.xlu0 %v3117, 80
  %v3119 = vpop.permute.xlu0 %3118
  %v3123 = vunpack.c.l.s4 1983009808
  %v3124 = vunpack.c.0.s8 %v3123
  %v3125 = vlaneseq
  %v3126 = vshrl.u32 %v3125, 7
  %v3127 = vsub.s32 %v3124, %v3126
  %v3128 = vrot.slane %v2525, %v3127
  %3129 = vrot.lane.b32.xlu0 %v3128, 96
  %v3130 = vpop.permute.xlu0 %3129
  %v3134 = vunpack.c.l.s4 1983009808
  %v3135 = vunpack.c.0.s8 %v3134
  %v3136 = vlaneseq
  %v3137 = vshrl.u32 %v3136, 7
  %v3138 = vsub.s32 %v3135, %v3137
  %v3139 = vrot.slane %v2526, %v3138
  %3140 = vrot.lane.b32.xlu0 %v3139, 112
  %v3141 = vpop.permute.xlu0 %3140
  %v3143 = vsel %vm796, %v2246, %v2536
  %vm3144 = vcmask 261120
  %v3145 = vsel %vm3144, %v3143, %v2547
  %vm3146 = vcmask 392192
  %v3147 = vsel %vm3146, %v3145, %v2558
  %v3148 = vsel %vm985, %v3147, %v2569
  %vm3149 = vcmask 654336
  %v3150 = vsel %vm3149, %v3148, %v2580
  %vm3151 = vcmask 785408
  %v3152 = vsel %vm3151, %v3150, %v2591
  %vm3153 = vcmask 916480
  %v3154 = vsel %vm3153, %v3152, %v2602
  %v3155 = vsel %vm796, %v2282, %v2613
  %v3156 = vsel %vm3144, %v3155, %v2624
  %v3157 = vsel %vm3146, %v3156, %v2635
  %v3158 = vsel %vm985, %v3157, %v2646
  %v3159 = vsel %vm3149, %v3158, %v2657
  %v3160 = vsel %vm3151, %v3159, %v2668
  %v3161 = vsel %vm3153, %v3160, %v2679
  %v3162 = vsel %vm796, %v2318, %v2690
  %v3163 = vsel %vm3144, %v3162, %v2701
  %v3164 = vsel %vm3146, %v3163, %v2712
  %v3165 = vsel %vm985, %v3164, %v2723
  %v3166 = vsel %vm3149, %v3165, %v2734
  %v3167 = vsel %vm3151, %v3166, %v2745
  %v3168 = vsel %vm3153, %v3167, %v2756
  %v3169 = vsel %vm796, %v2354, %v2767
  %v3170 = vsel %vm3144, %v3169, %v2778
  %v3171 = vsel %vm3146, %v3170, %v2789
  %v3172 = vsel %vm985, %v3171, %v2800
  %v3173 = vsel %vm3149, %v3172, %v2811
  %v3174 = vsel %vm3151, %v3173, %v2822
  %v3175 = vsel %vm3153, %v3174, %v2833
  %v3176 = vsel %vm796, %v2390, %v2844
  %v3177 = vsel %vm3144, %v3176, %v2855
  %v3178 = vsel %vm3146, %v3177, %v2866
  %v3179 = vsel %vm985, %v3178, %v2877
  %v3180 = vsel %vm3149, %v3179, %v2888
  %v3181 = vsel %vm3151, %v3180, %v2899
  %v3182 = vsel %vm3153, %v3181, %v2910
  %v3183 = vsel %vm796, %v2426, %v2921
  %v3184 = vsel %vm3144, %v3183, %v2932
  %v3185 = vsel %vm3146, %v3184, %v2943
  %v3186 = vsel %vm985, %v3185, %v2954
  %v3187 = vsel %vm3149, %v3186, %v2965
  %v3188 = vsel %vm3151, %v3187, %v2976
  %v3189 = vsel %vm3153, %v3188, %v2987
  %v3190 = vsel %vm796, %v2462, %v2998
  %v3191 = vsel %vm3144, %v3190, %v3009
  %v3192 = vsel %vm3146, %v3191, %v3020
  %v3193 = vsel %vm985, %v3192, %v3031
  %v3194 = vsel %vm3149, %v3193, %v3042
  %v3195 = vsel %vm3151, %v3194, %v3053
  %v3196 = vsel %vm3153, %v3195, %v3064
  %v3197 = vsel %vm796, %v2498, %v3075
  %v3198 = vsel %vm3144, %v3197, %v3086
  %v3199 = vsel %vm3146, %v3198, %v3097
  %v3200 = vsel %vm985, %v3199, %v3108
  %v3201 = vsel %vm3149, %v3200, %v3119
  %v3202 = vsel %vm3151, %v3201, %v3130
  %v3203 = vsel %vm3153, %v3202, %v3141
  %v3212 = vcombine.low %v3154, %v3161
  %v3213 = vcombine.low %v3168, %v3175
  %v3215 = vunpack.c.l.s4 1983009808
  %v3216 = vunpack.c.0.s8 %v3215
  %v3217 = vlaneseq
  %v3218 = vshrl.u32 %v3217, 7
  %v3219 = vsub.s32 %v3216, %v3218
  %v3220 = vrot.slane %v3212, %v3219
  %v3222 = vunpack.c.l.s4 1983009808
  %v3223 = vunpack.c.0.s8 %v3222
  %v3224 = vlaneseq
  %v3225 = vshrl.u32 %v3224, 7
  %v3226 = vsub.s32 %v3223, %v3225
  %v3227 = vrot.slane %v3213, %v3226
  %v3228 = vcombine.low %v3220, %v3227
  %v3229 = vcombine.low %v3182, %v3189
  %v3230 = vcombine.low %v3196, %v3203
  %v3232 = vunpack.c.l.s4 1983009808
  %v3233 = vunpack.c.0.s8 %v3232
  %v3234 = vlaneseq
  %v3235 = vshrl.u32 %v3234, 7
  %v3236 = vsub.s32 %v3233, %v3235
  %v3237 = vrot.slane %v3229, %v3236
  %v3239 = vunpack.c.l.s4 1983009808
  %v3240 = vunpack.c.0.s8 %v3239
  %v3241 = vlaneseq
  %v3242 = vshrl.u32 %v3241, 7
  %v3243 = vsub.s32 %v3240, %v3242
  %v3244 = vrot.slane %v3230, %v3243
  %v3245 = vcombine.low %v3237, %v3244
  %3248 = vst [vmem:[%s3] sm:$0xff] %v3228
  %3249 = vst [vmem:[%s3 + $0x8] sm:$0xff] %v3245
  // Predicated region
  $region14: #{se_layer.1} parent=0 // pred_check
    _
  $region15: #{se_layer.1} parent=0 // pred_check_branch
    %3251 = sbr.rel (0) target = $region17
  $region16: #{se_layer.1} parent=0 // pred_region
    _
  $region17: #{se_layer.1} parent=0 // pred_fallthru
    _
  // Predicated region
  $region18: #{se_layer.1} parent=0 // pred_check
    _
  $region19: #{se_layer.1} parent=0 // pred_check_branch
    %3253 = sbr.rel (0) target = $region21
  $region20: #{se_layer.1} parent=0 // pred_region
    _
  $region21: #{se_layer.1} parent=0 // pred_fallthru
    _

</llo_original>
